<compile_context>
chip_gen: v6e
topology: v6e:2x2x1
jax: 0.10.0
libtpu: 0.0.40
codegen_flags: <defaults>
</compile_context>

<pallas_src>
import functools

import jax
import jax.numpy as jnp
from jax.experimental import pallas as pl
from jax.experimental.pallas import tpu as pltpu


def _lstm_fc_kernel(x_ref, wih_ref, whh_ref, b_ref, fcw_ref, fcb_ref,
                    h0_ref, c0_ref,
                    out_ref, hn_ref, cn_ref,
                    *, seq_len, batch, hidden_size):
    """Whole LSTM rollout + final Linear, all tiles resident in VMEM.

    x_ref   : (T*B, I)    time-major flattened input (wrapper does the transpose)
    wih_ref : (I, 4H)     fused per-gate input weights (transposed, order i|f|g|o)
    whh_ref : (H, 4H)     fused per-gate recurrent weights (transposed)
    b_ref   : (1, 4H)     combined bias (b_ih + b_hh)
    fcw_ref : (H, 128)    fc weight^T zero-padded to 128 lanes (real cols = 2)
    fcb_ref : (1, 128)    fc bias, zero-padded
    h0_ref, c0_ref : (B, H)
    out_ref : (B, 128), hn_ref/cn_ref : (B, H)
    """
    H = hidden_size
    B = batch
    G = 4 * H

    # Constant lane scale (built once, VPU): doubles the g-gate columns so a
    # single sigmoid pass produces every gate via tanh(x) == 2*sigmoid(2x) - 1.
    lane = jax.lax.broadcasted_iota(jnp.int32, (1, G), 1)
    g_scale = jnp.where((lane >= 2 * H) & (lane < 3 * H),
                        jnp.float32(2.0), jnp.float32(1.0))

    # --- Prologue: input projection for ALL timesteps in one MXU matmul (off
    # the serial h-dependence chain). Rows are time-major: row (t*B + b).
    xz = (jnp.dot(x_ref[...], wih_ref[...], preferred_element_type=jnp.float32)
          + b_ref[...]) * g_scale                       # (T*B, 4H), g-cols doubled
    whh = whh_ref[...] * g_scale                        # (H, 4H),   g-cols doubled

    h = h0_ref[...]
    c = c0_ref[...]

    # seq_len is small & static -> unrolled Python loop (traced once).
    # TODO(synk): switch to lax.fori_loop(..., unroll=True) carrying (h, c)
    # if seq_len grows beyond ~32 to keep vreg live ranges flat.
    for t in range(seq_len):
        # Aligned (B, 4H) sublane slice + one (B,H)@(H,4H) MXU matmul per step.
        z = xz[t * B:(t + 1) * B, :] + jnp.dot(
            h, whh, preferred_element_type=jnp.float32)       # (B, 4H)
        # Single full-vreg EUP pass for all four gates.
        s = jax.nn.sigmoid(z)
        i_g = s[:, 0 * H:1 * H]
        f_g = s[:, 1 * H:2 * H]
        g_g = 2.0 * s[:, 2 * H:3 * H] - 1.0   # == tanh of the unscaled pre-act
        o_g = s[:, 3 * H:4 * H]
        c = f_g * c + i_g * g_g
        h = o_g * jnp.tanh(c)

    hn_ref[...] = h
    cn_ref[...] = c
    # Lane-dense (B, 128) output store; wrapper slices the first 2 columns.
    out_ref[...] = (jnp.dot(h, fcw_ref[...], preferred_element_type=jnp.float32)
                    + fcb_ref[...])


def lstm_model_forward(x, hidden, params):
    """Mirrors LSTMModel.forward(x, hidden) -> (out, (h_n, c_n))."""
    h0, c0 = hidden                    # (num_layers=1, B, H) each
    B, T, I = x.shape
    H = params["whh"].shape[0]
    OUT_PAD = 128                      # lane-dense fc output width

    # Pad batch up to a multiple of 8 sublanes (rows are independent, padded
    # rows are sliced off below, so correctness is unaffected).
    B_pad = max(8, ((B + 7) // 8) * 8)
    pad_b = B_pad - B
    x_pad = jnp.pad(x, ((0, pad_b), (0, 0), (0, 0)))
    h0_pad = jnp.pad(h0[0], ((0, pad_b), (0, 0)))
    c0_pad = jnp.pad(c0[0], ((0, pad_b), (0, 0)))

    # Layout plumbing only (no compute hoisted): time-major flatten so the
    # kernel prologue can run one (T*B, I) @ (I, 4H) matmul and take aligned
    # (B_pad, 4H) sublane slices per timestep.
    x_tb = jnp.transpose(x_pad, (1, 0, 2)).reshape(T * B_pad, I)

    # Widen fc weight/bias to 128 zero-padded columns (lane-dense store).
    fcw_pad = jnp.pad(params["fcw"],
                      ((0, 0), (0, OUT_PAD - params["fcw"].shape[1])))
    fcb_pad = jnp.pad(params["fcb"],
                      ((0, 0), (0, OUT_PAD - params["fcb"].shape[1])))

    kernel = functools.partial(_lstm_fc_kernel,
                               seq_len=T, batch=B_pad, hidden_size=H)
    vmem = pl.BlockSpec(memory_space=pltpu.MemorySpace.VMEM)

    # NOTE(v7x): once real batch >= ~16, add grid=(2,) over batch halves with
    # dimension_semantics=("parallel",) so both TensorCores run independent
    # recurrences; unnecessary overhead at these shapes.
    out_p, hn_p, cn_p = pl.pallas_call(
        kernel,
        out_shape=(
            jax.ShapeDtypeStruct((B_pad, OUT_PAD), jnp.float32),
            jax.ShapeDtypeStruct((B_pad, H), jnp.float32),
            jax.ShapeDtypeStruct((B_pad, H), jnp.float32),
        ),
        in_specs=[vmem] * 8,
        out_specs=(vmem, vmem, vmem),
    )(x_tb, params["wih"], params["whh"], params["b"],
      fcw_pad, fcb_pad, h0_pad, c0_pad)

    out = out_p[:B, :2]
    hn = hn_p[:B][None]
    cn = cn_p[:B][None]
    return out, (hn, cn)


def lstm_model_reference(x, hidden, params):
    """Plain-JAX reference with identical semantics (for correctness check)."""
    h = hidden[0][0]
    c = hidden[1][0]
    H = params["whh"].shape[0]
    wih, whh, b = params["wih"], params["whh"], params["b"]
    for t in range(x.shape[1]):
        z = x[:, t, :] @ wih + h @ whh + b       # (B, 4H), gate order i|f|g|o
        i_g = jax.nn.sigmoid(z[:, 0 * H:1 * H])
        f_g = jax.nn.sigmoid(z[:, 1 * H:2 * H])
        g_g = jnp.tanh(z[:, 2 * H:3 * H])
        o_g = jax.nn.sigmoid(z[:, 3 * H:4 * H])
        c = f_g * c + i_g * g_g
        h = o_g * jnp.tanh(c)
    out = h @ params["fcw"] + params["fcb"]
    return out, (h[None], c[None])


def init_params(key, input_size=4, hidden_size=32):
    """Deterministic synthetic init (uniform(-1/sqrt(H), 1/sqrt(H)) like PyTorch),
    stored in the fused/transposed kernel layout (gate order i|f|g|o)."""
    bound = 1.0 / jnp.sqrt(jnp.float32(hidden_size))
    ks = jax.random.split(key, 6)
    u = lambda k, shape: jax.random.uniform(k, shape, jnp.float32, -bound, bound)
    G = 4 * hidden_size
    b_ih = u(ks[2], (1, G))
    b_hh = u(ks[3], (1, G))
    return {
        "wih": u(ks[0], (input_size, G)),    # W_ih^T, gates fused along columns
        "whh": u(ks[1], (hidden_size, G)),   # W_hh^T, gates fused along columns
        "b":   b_ih + b_hh,                  # combined bias (1, 4H)
        "fcw": u(ks[4], (hidden_size, 2)),   # fc weight^T
        "fcb": u(ks[5], (1, 2)),             # fc bias
    }


if __name__ == "__main__":
    key = jax.random.PRNGKey(0)
    k_param, k_x = jax.random.split(key)

    batch, seq, input_size, hidden_size, num_layers = 2, 8, 4, 32, 1

    params = init_params(k_param, input_size, hidden_size)
    x = jax.random.normal(k_x, (batch, seq, input_size), jnp.float32)
    # init_hidden(batch)
    h0 = jnp.zeros((num_layers, batch, hidden_size), jnp.float32)
    c0 = jnp.zeros((num_layers, batch, hidden_size), jnp.float32)

    out, (hn, cn) = lstm_model_forward(x, (h0, c0), params)
    out = jax.block_until_ready(out)
    hn = jax.block_until_ready(hn)
    cn = jax.block_until_ready(cn)

    out_ref, (hn_ref, cn_ref) = lstm_model_reference(x, (h0, c0), params)
    assert out.shape == (batch, 2)
    assert hn.shape == (num_layers, batch, hidden_size)
    assert cn.shape == (num_layers, batch, hidden_size)
    assert jnp.allclose(out, out_ref, atol=1e-5), "fc output mismatch"
    assert jnp.allclose(hn, hn_ref, atol=1e-5), "h_n mismatch"
    assert jnp.allclose(cn, cn_ref, atol=1e-5), "c_n mismatch"

    print("KERNEL_OK")
</pallas_src>

<mosaic_0001>
module attributes {stable_mosaic.version = 11 : i64} {
  func.func @_lstm_fc_kernel(%arg0: memref<64x4xf32, #tpu.memory_space<vmem>>, %arg1: memref<4x128xf32, #tpu.memory_space<vmem>>, %arg2: memref<32x128xf32, #tpu.memory_space<vmem>>, %arg3: memref<1x128xf32, #tpu.memory_space<vmem>>, %arg4: memref<32x128xf32, #tpu.memory_space<vmem>>, %arg5: memref<1x128xf32, #tpu.memory_space<vmem>>, %arg6: memref<8x32xf32, #tpu.memory_space<vmem>>, %arg7: memref<8x32xf32, #tpu.memory_space<vmem>>, %arg8: memref<8x128xf32, #tpu.memory_space<vmem>>, %arg9: memref<8x32xf32, #tpu.memory_space<vmem>>, %arg10: memref<8x32xf32, #tpu.memory_space<vmem>>) attributes {dimension_semantics = [], scalar_prefetch = 0 : i64, scratch_operands = 0 : i64, tpu.core_type = #tpu.core_type<tc>} {
    %0 = tpu.iota {dimensions = array<i32: 1>} : vector<1x128xi32>
    %c64_i32 = arith.constant 64 : i32
    %1 = vector.broadcast %c64_i32 : i32 to vector<1x128xi32>
    %2 = arith.cmpi sge, %0, %1 : vector<1x128xi32>
    %c96_i32 = arith.constant 96 : i32
    %3 = vector.broadcast %c96_i32 : i32 to vector<1x128xi32>
    %4 = arith.cmpi slt, %0, %3 : vector<1x128xi32>
    %5 = arith.andi %2, %4 : vector<1x128xi1>
    %cst = arith.constant 2.000000e+00 : f32
    %cst_0 = arith.constant 1.000000e+00 : f32
    %6 = vector.broadcast %cst : f32 to vector<1x128xf32>
    %7 = vector.broadcast %cst_0 : f32 to vector<1x128xf32>
    %8 = arith.select %5, %6, %7 : vector<1x128xi1>, vector<1x128xf32>
    %c0 = arith.constant 0 : index
    %c0_1 = arith.constant 0 : index
    %9 = vector.load %arg0[%c0, %c0_1] : memref<64x4xf32, #tpu.memory_space<vmem>>, vector<64x4xf32>
    %c0_2 = arith.constant 0 : index
    %c0_3 = arith.constant 0 : index
    %10 = vector.load %arg1[%c0_2, %c0_3] : memref<4x128xf32, #tpu.memory_space<vmem>>, vector<4x128xf32>
    %cst_4 = arith.constant dense<0.000000e+00> : vector<64x128xf32>
    %11 = tpu.matmul %9, %10, %cst_4 {dimension_numbers = #tpu.dot_dimension_numbers<[1], [0], [0], [1], [0, 0, 1, 1], [], []>} : vector<64x4xf32>, vector<4x128xf32>, vector<64x128xf32> -> vector<64x128xf32>
    %c0_5 = arith.constant 0 : index
    %c0_6 = arith.constant 0 : index
    %12 = vector.load %arg3[%c0_5, %c0_6] : memref<1x128xf32, #tpu.memory_space<vmem>>, vector<1x128xf32>
    %13 = vector.broadcast %12 : vector<1x128xf32> to vector<64x128xf32>
    %14 = arith.addf %11, %13 : vector<64x128xf32>
    %15 = vector.broadcast %8 : vector<1x128xf32> to vector<64x128xf32>
    %16 = arith.mulf %14, %15 : vector<64x128xf32>
    %c0_7 = arith.constant 0 : index
    %c0_8 = arith.constant 0 : index
    %17 = vector.load %arg2[%c0_7, %c0_8] : memref<32x128xf32, #tpu.memory_space<vmem>>, vector<32x128xf32>
    %18 = vector.broadcast %8 : vector<1x128xf32> to vector<32x128xf32>
    %19 = arith.mulf %17, %18 : vector<32x128xf32>
    %c0_9 = arith.constant 0 : index
    %c0_10 = arith.constant 0 : index
    %20 = vector.load %arg6[%c0_9, %c0_10] : memref<8x32xf32, #tpu.memory_space<vmem>>, vector<8x32xf32>
    %c0_11 = arith.constant 0 : index
    %c0_12 = arith.constant 0 : index
    %21 = vector.load %arg7[%c0_11, %c0_12] : memref<8x32xf32, #tpu.memory_space<vmem>>, vector<8x32xf32>
    %22 = vector.extract_strided_slice %16 {offsets = [0, 0], sizes = [8, 128], strides = [1, 1]} : vector<64x128xf32> to vector<8x128xf32>
    %cst_13 = arith.constant dense<0.000000e+00> : vector<8x128xf32>
    %23 = tpu.matmul %20, %19, %cst_13 {dimension_numbers = #tpu.dot_dimension_numbers<[1], [0], [0], [1], [0, 0, 1, 1], [], []>} : vector<8x32xf32>, vector<32x128xf32>, vector<8x128xf32> -> vector<8x128xf32>
    %24 = arith.addf %22, %23 : vector<8x128xf32>
    %25 = arith.negf %24 : vector<8x128xf32>
    %26 = math.exp %25 : vector<8x128xf32>
    %cst_14 = arith.constant 1.000000e+00 : f32
    %27 = vector.broadcast %cst_14 : f32 to vector<8x128xf32>
    %28 = arith.addf %27, %26 : vector<8x128xf32>
    %29 = arith.divf %27, %28 : vector<8x128xf32>
    %30 = vector.extract_strided_slice %29 {offsets = [0, 0], sizes = [8, 32], strides = [1, 1]} : vector<8x128xf32> to vector<8x32xf32>
    %31 = vector.extract_strided_slice %29 {offsets = [0, 32], sizes = [8, 32], strides = [1, 1]} : vector<8x128xf32> to vector<8x32xf32>
    %32 = vector.extract_strided_slice %29 {offsets = [0, 64], sizes = [8, 32], strides = [1, 1]} : vector<8x128xf32> to vector<8x32xf32>
    %cst_15 = arith.constant 2.000000e+00 : f32
    %33 = vector.broadcast %cst_15 : f32 to vector<8x32xf32>
    %34 = arith.mulf %33, %32 : vector<8x32xf32>
    %cst_16 = arith.constant 1.000000e+00 : f32
    %35 = vector.broadcast %cst_16 : f32 to vector<8x32xf32>
    %36 = arith.subf %34, %35 : vector<8x32xf32>
    %37 = vector.extract_strided_slice %29 {offsets = [0, 96], sizes = [8, 32], strides = [1, 1]} : vector<8x128xf32> to vector<8x32xf32>
    %38 = arith.mulf %31, %21 : vector<8x32xf32>
    %39 = arith.mulf %30, %36 : vector<8x32xf32>
    %40 = arith.addf %38, %39 : vector<8x32xf32>
    %41 = math.tanh %40 : vector<8x32xf32>
    %42 = arith.mulf %37, %41 : vector<8x32xf32>
    %43 = vector.extract_strided_slice %16 {offsets = [8, 0], sizes = [8, 128], strides = [1, 1]} : vector<64x128xf32> to vector<8x128xf32>
    %cst_17 = arith.constant dense<0.000000e+00> : vector<8x128xf32>
    %44 = tpu.matmul %42, %19, %cst_17 {dimension_numbers = #tpu.dot_dimension_numbers<[1], [0], [0], [1], [0, 0, 1, 1], [], []>} : vector<8x32xf32>, vector<32x128xf32>, vector<8x128xf32> -> vector<8x128xf32>
    %45 = arith.addf %43, %44 : vector<8x128xf32>
    %46 = arith.negf %45 : vector<8x128xf32>
    %47 = math.exp %46 : vector<8x128xf32>
    %cst_18 = arith.constant 1.000000e+00 : f32
    %48 = vector.broadcast %cst_18 : f32 to vector<8x128xf32>
    %49 = arith.addf %48, %47 : vector<8x128xf32>
    %50 = arith.divf %48, %49 : vector<8x128xf32>
    %51 = vector.extract_strided_slice %50 {offsets = [0, 0], sizes = [8, 32], strides = [1, 1]} : vector<8x128xf32> to vector<8x32xf32>
    %52 = vector.extract_strided_slice %50 {offsets = [0, 32], sizes = [8, 32], strides = [1, 1]} : vector<8x128xf32> to vector<8x32xf32>
    %53 = vector.extract_strided_slice %50 {offsets = [0, 64], sizes = [8, 32], strides = [1, 1]} : vector<8x128xf32> to vector<8x32xf32>
    %cst_19 = arith.constant 2.000000e+00 : f32
    %54 = vector.broadcast %cst_19 : f32 to vector<8x32xf32>
    %55 = arith.mulf %54, %53 : vector<8x32xf32>
    %cst_20 = arith.constant 1.000000e+00 : f32
    %56 = vector.broadcast %cst_20 : f32 to vector<8x32xf32>
    %57 = arith.subf %55, %56 : vector<8x32xf32>
    %58 = vector.extract_strided_slice %50 {offsets = [0, 96], sizes = [8, 32], strides = [1, 1]} : vector<8x128xf32> to vector<8x32xf32>
    %59 = arith.mulf %52, %40 : vector<8x32xf32>
    %60 = arith.mulf %51, %57 : vector<8x32xf32>
    %61 = arith.addf %59, %60 : vector<8x32xf32>
    %62 = math.tanh %61 : vector<8x32xf32>
    %63 = arith.mulf %58, %62 : vector<8x32xf32>
    %64 = vector.extract_strided_slice %16 {offsets = [16, 0], sizes = [8, 128], strides = [1, 1]} : vector<64x128xf32> to vector<8x128xf32>
    %cst_21 = arith.constant dense<0.000000e+00> : vector<8x128xf32>
    %65 = tpu.matmul %63, %19, %cst_21 {dimension_numbers = #tpu.dot_dimension_numbers<[1], [0], [0], [1], [0, 0, 1, 1], [], []>} : vector<8x32xf32>, vector<32x128xf32>, vector<8x128xf32> -> vector<8x128xf32>
    %66 = arith.addf %64, %65 : vector<8x128xf32>
    %67 = arith.negf %66 : vector<8x128xf32>
    %68 = math.exp %67 : vector<8x128xf32>
    %cst_22 = arith.constant 1.000000e+00 : f32
    %69 = vector.broadcast %cst_22 : f32 to vector<8x128xf32>
    %70 = arith.addf %69, %68 : vector<8x128xf32>
    %71 = arith.divf %69, %70 : vector<8x128xf32>
    %72 = vector.extract_strided_slice %71 {offsets = [0, 0], sizes = [8, 32], strides = [1, 1]} : vector<8x128xf32> to vector<8x32xf32>
    %73 = vector.extract_strided_slice %71 {offsets = [0, 32], sizes = [8, 32], strides = [1, 1]} : vector<8x128xf32> to vector<8x32xf32>
    %74 = vector.extract_strided_slice %71 {offsets = [0, 64], sizes = [8, 32], strides = [1, 1]} : vector<8x128xf32> to vector<8x32xf32>
    %cst_23 = arith.constant 2.000000e+00 : f32
    %75 = vector.broadcast %cst_23 : f32 to vector<8x32xf32>
    %76 = arith.mulf %75, %74 : vector<8x32xf32>
    %cst_24 = arith.constant 1.000000e+00 : f32
    %77 = vector.broadcast %cst_24 : f32 to vector<8x32xf32>
    %78 = arith.subf %76, %77 : vector<8x32xf32>
    %79 = vector.extract_strided_slice %71 {offsets = [0, 96], sizes = [8, 32], strides = [1, 1]} : vector<8x128xf32> to vector<8x32xf32>
    %80 = arith.mulf %73, %61 : vector<8x32xf32>
    %81 = arith.mulf %72, %78 : vector<8x32xf32>
    %82 = arith.addf %80, %81 : vector<8x32xf32>
    %83 = math.tanh %82 : vector<8x32xf32>
    %84 = arith.mulf %79, %83 : vector<8x32xf32>
    %85 = vector.extract_strided_slice %16 {offsets = [24, 0], sizes = [8, 128], strides = [1, 1]} : vector<64x128xf32> to vector<8x128xf32>
    %cst_25 = arith.constant dense<0.000000e+00> : vector<8x128xf32>
    %86 = tpu.matmul %84, %19, %cst_25 {dimension_numbers = #tpu.dot_dimension_numbers<[1], [0], [0], [1], [0, 0, 1, 1], [], []>} : vector<8x32xf32>, vector<32x128xf32>, vector<8x128xf32> -> vector<8x128xf32>
    %87 = arith.addf %85, %86 : vector<8x128xf32>
    %88 = arith.negf %87 : vector<8x128xf32>
    %89 = math.exp %88 : vector<8x128xf32>
    %cst_26 = arith.constant 1.000000e+00 : f32
    %90 = vector.broadcast %cst_26 : f32 to vector<8x128xf32>
    %91 = arith.addf %90, %89 : vector<8x128xf32>
    %92 = arith.divf %90, %91 : vector<8x128xf32>
    %93 = vector.extract_strided_slice %92 {offsets = [0, 0], sizes = [8, 32], strides = [1, 1]} : vector<8x128xf32> to vector<8x32xf32>
    %94 = vector.extract_strided_slice %92 {offsets = [0, 32], sizes = [8, 32], strides = [1, 1]} : vector<8x128xf32> to vector<8x32xf32>
    %95 = vector.extract_strided_slice %92 {offsets = [0, 64], sizes = [8, 32], strides = [1, 1]} : vector<8x128xf32> to vector<8x32xf32>
    %cst_27 = arith.constant 2.000000e+00 : f32
    %96 = vector.broadcast %cst_27 : f32 to vector<8x32xf32>
    %97 = arith.mulf %96, %95 : vector<8x32xf32>
    %cst_28 = arith.constant 1.000000e+00 : f32
    %98 = vector.broadcast %cst_28 : f32 to vector<8x32xf32>
    %99 = arith.subf %97, %98 : vector<8x32xf32>
    %100 = vector.extract_strided_slice %92 {offsets = [0, 96], sizes = [8, 32], strides = [1, 1]} : vector<8x128xf32> to vector<8x32xf32>
    %101 = arith.mulf %94, %82 : vector<8x32xf32>
    %102 = arith.mulf %93, %99 : vector<8x32xf32>
    %103 = arith.addf %101, %102 : vector<8x32xf32>
    %104 = math.tanh %103 : vector<8x32xf32>
    %105 = arith.mulf %100, %104 : vector<8x32xf32>
    %106 = vector.extract_strided_slice %16 {offsets = [32, 0], sizes = [8, 128], strides = [1, 1]} : vector<64x128xf32> to vector<8x128xf32>
    %cst_29 = arith.constant dense<0.000000e+00> : vector<8x128xf32>
    %107 = tpu.matmul %105, %19, %cst_29 {dimension_numbers = #tpu.dot_dimension_numbers<[1], [0], [0], [1], [0, 0, 1, 1], [], []>} : vector<8x32xf32>, vector<32x128xf32>, vector<8x128xf32> -> vector<8x128xf32>
    %108 = arith.addf %106, %107 : vector<8x128xf32>
    %109 = arith.negf %108 : vector<8x128xf32>
    %110 = math.exp %109 : vector<8x128xf32>
    %cst_30 = arith.constant 1.000000e+00 : f32
    %111 = vector.broadcast %cst_30 : f32 to vector<8x128xf32>
    %112 = arith.addf %111, %110 : vector<8x128xf32>
    %113 = arith.divf %111, %112 : vector<8x128xf32>
    %114 = vector.extract_strided_slice %113 {offsets = [0, 0], sizes = [8, 32], strides = [1, 1]} : vector<8x128xf32> to vector<8x32xf32>
    %115 = vector.extract_strided_slice %113 {offsets = [0, 32], sizes = [8, 32], strides = [1, 1]} : vector<8x128xf32> to vector<8x32xf32>
    %116 = vector.extract_strided_slice %113 {offsets = [0, 64], sizes = [8, 32], strides = [1, 1]} : vector<8x128xf32> to vector<8x32xf32>
    %cst_31 = arith.constant 2.000000e+00 : f32
    %117 = vector.broadcast %cst_31 : f32 to vector<8x32xf32>
    %118 = arith.mulf %117, %116 : vector<8x32xf32>
    %cst_32 = arith.constant 1.000000e+00 : f32
    %119 = vector.broadcast %cst_32 : f32 to vector<8x32xf32>
    %120 = arith.subf %118, %119 : vector<8x32xf32>
    %121 = vector.extract_strided_slice %113 {offsets = [0, 96], sizes = [8, 32], strides = [1, 1]} : vector<8x128xf32> to vector<8x32xf32>
    %122 = arith.mulf %115, %103 : vector<8x32xf32>
    %123 = arith.mulf %114, %120 : vector<8x32xf32>
    %124 = arith.addf %122, %123 : vector<8x32xf32>
    %125 = math.tanh %124 : vector<8x32xf32>
    %126 = arith.mulf %121, %125 : vector<8x32xf32>
    %127 = vector.extract_strided_slice %16 {offsets = [40, 0], sizes = [8, 128], strides = [1, 1]} : vector<64x128xf32> to vector<8x128xf32>
    %cst_33 = arith.constant dense<0.000000e+00> : vector<8x128xf32>
    %128 = tpu.matmul %126, %19, %cst_33 {dimension_numbers = #tpu.dot_dimension_numbers<[1], [0], [0], [1], [0, 0, 1, 1], [], []>} : vector<8x32xf32>, vector<32x128xf32>, vector<8x128xf32> -> vector<8x128xf32>
    %129 = arith.addf %127, %128 : vector<8x128xf32>
    %130 = arith.negf %129 : vector<8x128xf32>
    %131 = math.exp %130 : vector<8x128xf32>
    %cst_34 = arith.constant 1.000000e+00 : f32
    %132 = vector.broadcast %cst_34 : f32 to vector<8x128xf32>
    %133 = arith.addf %132, %131 : vector<8x128xf32>
    %134 = arith.divf %132, %133 : vector<8x128xf32>
    %135 = vector.extract_strided_slice %134 {offsets = [0, 0], sizes = [8, 32], strides = [1, 1]} : vector<8x128xf32> to vector<8x32xf32>
    %136 = vector.extract_strided_slice %134 {offsets = [0, 32], sizes = [8, 32], strides = [1, 1]} : vector<8x128xf32> to vector<8x32xf32>
    %137 = vector.extract_strided_slice %134 {offsets = [0, 64], sizes = [8, 32], strides = [1, 1]} : vector<8x128xf32> to vector<8x32xf32>
    %cst_35 = arith.constant 2.000000e+00 : f32
    %138 = vector.broadcast %cst_35 : f32 to vector<8x32xf32>
    %139 = arith.mulf %138, %137 : vector<8x32xf32>
    %cst_36 = arith.constant 1.000000e+00 : f32
    %140 = vector.broadcast %cst_36 : f32 to vector<8x32xf32>
    %141 = arith.subf %139, %140 : vector<8x32xf32>
    %142 = vector.extract_strided_slice %134 {offsets = [0, 96], sizes = [8, 32], strides = [1, 1]} : vector<8x128xf32> to vector<8x32xf32>
    %143 = arith.mulf %136, %124 : vector<8x32xf32>
    %144 = arith.mulf %135, %141 : vector<8x32xf32>
    %145 = arith.addf %143, %144 : vector<8x32xf32>
    %146 = math.tanh %145 : vector<8x32xf32>
    %147 = arith.mulf %142, %146 : vector<8x32xf32>
    %148 = vector.extract_strided_slice %16 {offsets = [48, 0], sizes = [8, 128], strides = [1, 1]} : vector<64x128xf32> to vector<8x128xf32>
    %cst_37 = arith.constant dense<0.000000e+00> : vector<8x128xf32>
    %149 = tpu.matmul %147, %19, %cst_37 {dimension_numbers = #tpu.dot_dimension_numbers<[1], [0], [0], [1], [0, 0, 1, 1], [], []>} : vector<8x32xf32>, vector<32x128xf32>, vector<8x128xf32> -> vector<8x128xf32>
    %150 = arith.addf %148, %149 : vector<8x128xf32>
    %151 = arith.negf %150 : vector<8x128xf32>
    %152 = math.exp %151 : vector<8x128xf32>
    %cst_38 = arith.constant 1.000000e+00 : f32
    %153 = vector.broadcast %cst_38 : f32 to vector<8x128xf32>
    %154 = arith.addf %153, %152 : vector<8x128xf32>
    %155 = arith.divf %153, %154 : vector<8x128xf32>
    %156 = vector.extract_strided_slice %155 {offsets = [0, 0], sizes = [8, 32], strides = [1, 1]} : vector<8x128xf32> to vector<8x32xf32>
    %157 = vector.extract_strided_slice %155 {offsets = [0, 32], sizes = [8, 32], strides = [1, 1]} : vector<8x128xf32> to vector<8x32xf32>
    %158 = vector.extract_strided_slice %155 {offsets = [0, 64], sizes = [8, 32], strides = [1, 1]} : vector<8x128xf32> to vector<8x32xf32>
    %cst_39 = arith.constant 2.000000e+00 : f32
    %159 = vector.broadcast %cst_39 : f32 to vector<8x32xf32>
    %160 = arith.mulf %159, %158 : vector<8x32xf32>
    %cst_40 = arith.constant 1.000000e+00 : f32
    %161 = vector.broadcast %cst_40 : f32 to vector<8x32xf32>
    %162 = arith.subf %160, %161 : vector<8x32xf32>
    %163 = vector.extract_strided_slice %155 {offsets = [0, 96], sizes = [8, 32], strides = [1, 1]} : vector<8x128xf32> to vector<8x32xf32>
    %164 = arith.mulf %157, %145 : vector<8x32xf32>
    %165 = arith.mulf %156, %162 : vector<8x32xf32>
    %166 = arith.addf %164, %165 : vector<8x32xf32>
    %167 = math.tanh %166 : vector<8x32xf32>
    %168 = arith.mulf %163, %167 : vector<8x32xf32>
    %169 = vector.extract_strided_slice %16 {offsets = [56, 0], sizes = [8, 128], strides = [1, 1]} : vector<64x128xf32> to vector<8x128xf32>
    %cst_41 = arith.constant dense<0.000000e+00> : vector<8x128xf32>
    %170 = tpu.matmul %168, %19, %cst_41 {dimension_numbers = #tpu.dot_dimension_numbers<[1], [0], [0], [1], [0, 0, 1, 1], [], []>} : vector<8x32xf32>, vector<32x128xf32>, vector<8x128xf32> -> vector<8x128xf32>
    %171 = arith.addf %169, %170 : vector<8x128xf32>
    %172 = arith.negf %171 : vector<8x128xf32>
    %173 = math.exp %172 : vector<8x128xf32>
    %cst_42 = arith.constant 1.000000e+00 : f32
    %174 = vector.broadcast %cst_42 : f32 to vector<8x128xf32>
    %175 = arith.addf %174, %173 : vector<8x128xf32>
    %176 = arith.divf %174, %175 : vector<8x128xf32>
    %177 = vector.extract_strided_slice %176 {offsets = [0, 0], sizes = [8, 32], strides = [1, 1]} : vector<8x128xf32> to vector<8x32xf32>
    %178 = vector.extract_strided_slice %176 {offsets = [0, 32], sizes = [8, 32], strides = [1, 1]} : vector<8x128xf32> to vector<8x32xf32>
    %179 = vector.extract_strided_slice %176 {offsets = [0, 64], sizes = [8, 32], strides = [1, 1]} : vector<8x128xf32> to vector<8x32xf32>
    %cst_43 = arith.constant 2.000000e+00 : f32
    %180 = vector.broadcast %cst_43 : f32 to vector<8x32xf32>
    %181 = arith.mulf %180, %179 : vector<8x32xf32>
    %cst_44 = arith.constant 1.000000e+00 : f32
    %182 = vector.broadcast %cst_44 : f32 to vector<8x32xf32>
    %183 = arith.subf %181, %182 : vector<8x32xf32>
    %184 = vector.extract_strided_slice %176 {offsets = [0, 96], sizes = [8, 32], strides = [1, 1]} : vector<8x128xf32> to vector<8x32xf32>
    %185 = arith.mulf %178, %166 : vector<8x32xf32>
    %186 = arith.mulf %177, %183 : vector<8x32xf32>
    %187 = arith.addf %185, %186 : vector<8x32xf32>
    %188 = math.tanh %187 : vector<8x32xf32>
    %189 = arith.mulf %184, %188 : vector<8x32xf32>
    %c0_45 = arith.constant 0 : index
    %c0_46 = arith.constant 0 : index
    %190 = vector.load %arg9[%c0_45, %c0_46] : memref<8x32xf32, #tpu.memory_space<vmem>>, vector<8x32xf32>
    tpu.vector_store %arg9[%c0_45, %c0_46], %189 {strides = array<i32>} : memref<8x32xf32, #tpu.memory_space<vmem>>, vector<8x32xf32>,
    %c0_47 = arith.constant 0 : index
    %c0_48 = arith.constant 0 : index
    %191 = vector.load %arg10[%c0_47, %c0_48] : memref<8x32xf32, #tpu.memory_space<vmem>>, vector<8x32xf32>
    tpu.vector_store %arg10[%c0_47, %c0_48], %187 {strides = array<i32>} : memref<8x32xf32, #tpu.memory_space<vmem>>, vector<8x32xf32>,
    %c0_49 = arith.constant 0 : index
    %c0_50 = arith.constant 0 : index
    %192 = vector.load %arg4[%c0_49, %c0_50] : memref<32x128xf32, #tpu.memory_space<vmem>>, vector<32x128xf32>
    %cst_51 = arith.constant dense<0.000000e+00> : vector<8x128xf32>
    %193 = tpu.matmul %189, %192, %cst_51 {dimension_numbers = #tpu.dot_dimension_numbers<[1], [0], [0], [1], [0, 0, 1, 1], [], []>} : vector<8x32xf32>, vector<32x128xf32>, vector<8x128xf32> -> vector<8x128xf32>
    %c0_52 = arith.constant 0 : index
    %c0_53 = arith.constant 0 : index
    %194 = vector.load %arg5[%c0_52, %c0_53] : memref<1x128xf32, #tpu.memory_space<vmem>>, vector<1x128xf32>
    %195 = vector.broadcast %194 : vector<1x128xf32> to vector<8x128xf32>
    %196 = arith.addf %193, %195 : vector<8x128xf32>
    %c0_54 = arith.constant 0 : index
    %c0_55 = arith.constant 0 : index
    %197 = vector.load %arg8[%c0_54, %c0_55] : memref<8x128xf32, #tpu.memory_space<vmem>>, vector<8x128xf32>
    tpu.vector_store %arg8[%c0_54, %c0_55], %196 {strides = array<i32>} : memref<8x128xf32, #tpu.memory_space<vmem>>, vector<8x128xf32>,
    return
  }
}

</mosaic_0001>

<llo_original>
// kernel: tpu_custom_call.1
$region0: #{tpu_custom_call.1}
  #allocation0 [shape = 'u32[]', space=smem, size = 0x4, offset = 0x4, fixed_abs, tag = 'smem constant byte address 0x4 - core index']
  #allocation1 [shape = 'u32[144,128]{1,0:T(1,128)}', space=vmem, size = 0x12000, scoped, tag = 'internal scratch']
  %s0 = inlined_call_operand.vmem [shape: f32[64,4], index: 0, kind: input, shape index: {}]
  %s1 = inlined_call_operand.hbm [shape: f32[4,128], index: 1, kind: input, shape index: {}]
  %s2 = inlined_call_operand.vmem [shape: f32[32,128], index: 2, kind: input, shape index: {}]
  %s3 = inlined_call_operand.hbm [shape: f32[1,128], index: 3, kind: input, shape index: {}]
  %s4 = inlined_call_operand.vmem [shape: f32[32,128], index: 4, kind: input, shape index: {}]
  %s5 = inlined_call_operand.hbm [shape: f32[1,128], index: 5, kind: input, shape index: {}]
  %s6 = inlined_call_operand.vmem [shape: f32[8,32], index: 6, kind: input, shape index: {}]
  %s7 = inlined_call_operand.vmem [shape: f32[8,32], index: 7, kind: input, shape index: {}]
  %s8 = inlined_call_operand.hbm [shape: f32[8,128], index: 8, kind: output, shape index: {0}]
  %s9 = inlined_call_operand.hbm [shape: f32[8,32], index: 9, kind: output, shape index: {1}]
  %s10 = inlined_call_operand.hbm [shape: f32[8,32], index: 10, kind: output, shape index: {2}]
  %11 = xla_tuple %s8, %s9, %s10
  %s12 = sld [smem:[#allocation0]]
  $region70: #{tpu_custom_call.1} parent=0
    _
  %s14 = ssub.s32 1, %s12
  %s15 = scalar_select 0, %s14, %s12
  $region1: #{tpu_custom_call.1} parent=0
    #allocation2 [shape = 'u8[2048]{0}', space=vmem, size = 0x800, scoped, tag = 'input window, operand 1, single buffered']
    #allocation3 [shape = 's32[1]{0}', space=sflag, size = 0x4, scoped, tag = 'scoped memory for tpu_custom_call.1']
    #allocation4 [shape = 's32[1]{0}', space=sflag, size = 0x4, scoped, tag = 'scoped memory for tpu_custom_call.1']
    #allocation5 [shape = 'u8[512]{0}', space=vmem, size = 0x400, scoped, tag = 'input window, operand 3, single buffered']
    #allocation6 [shape = 's32[1]{0}', space=sflag, size = 0x4, scoped, tag = 'scoped memory for tpu_custom_call.1']
    #allocation7 [shape = 'u8[512]{0}', space=vmem, size = 0x400, scoped, tag = 'input window, operand 5, single buffered']
    #allocation8 [shape = 'u8[4096]{0}', space=vmem, size = 0x1000, scoped, tag = 'output window, operand 0, single buffered']
    #allocation9 [shape = 'u8[4096]{0}', space=vmem, size = 0x1000, scoped, tag = 'output window, operand 1, single buffered']
    #allocation10 [shape = 's32[1]{0}', space=sflag, size = 0x4, scoped, tag = 'scoped memory for tpu_custom_call.1']
    #allocation11 [shape = 'u8[4096]{0}', space=vmem, size = 0x1000, scoped, tag = 'output window, operand 2, single buffered']
    %16 = vsyncpa [#allocation3], 0
    %17 = vsyncpa [#allocation6], 0
    %18 = vsyncpa [#allocation4], 0
    %19 = vsyncpa [#allocation10], 0
    // Predicated region
    $region2: #{tpu_custom_call.1} parent=1 // pred_check
      _
    $region3: #{tpu_custom_call.1} parent=1 // pred_check_branch
      %21 = sbr.rel (0) target = $region5
    $region4: #{tpu_custom_call.1} parent=1 // pred_region
      _
    $region5: #{tpu_custom_call.1} parent=1 // pred_fallthru
      _
    // Predicated region
    $region6: #{tpu_custom_call.1} parent=1 // pred_check
      _
    $region7: #{tpu_custom_call.1} parent=1 // pred_check_branch
      %23 = sbr.rel (0) target = $region9
    $region8: #{tpu_custom_call.1} parent=1 // pred_region
      %s25 = ssub.s32 64, 64
      %26 = vsyncadd [#allocation3], %s25
      %s28 = sshll.u32 [#allocation2], 4
      %s29 = int_to_ptr.vmem [resolvable:$true] %s28
      %31 = dma.hbm_to_vmem [thread:$0]  %s1, 64, %s29, [#allocation3]
    $region9: #{tpu_custom_call.1} parent=1 // pred_fallthru
      _
    // Predicated region
    $region10: #{tpu_custom_call.1} parent=1 // pred_check
      _
    $region11: #{tpu_custom_call.1} parent=1 // pred_check_branch
      %33 = sbr.rel (0) target = $region13
    $region12: #{tpu_custom_call.1} parent=1 // pred_region
      _
    $region13: #{tpu_custom_call.1} parent=1 // pred_fallthru
      _
    // Predicated region
    $region14: #{tpu_custom_call.1} parent=1 // pred_check
      _
    $region15: #{tpu_custom_call.1} parent=1 // pred_check_branch
      %35 = sbr.rel (0) target = $region17
    $region16: #{tpu_custom_call.1} parent=1 // pred_region
      %s37 = ssub.s32 16, 16
      %38 = vsyncadd [#allocation6], %s37
      %s40 = sshll.u32 [#allocation5], 4
      %s41 = int_to_ptr.vmem [resolvable:$true] %s40
      %43 = dma.hbm_to_vmem [thread:$0]  %s3, 16, %s41, [#allocation6]
    $region17: #{tpu_custom_call.1} parent=1 // pred_fallthru
      _
    // Predicated region
    $region18: #{tpu_custom_call.1} parent=1 // pred_check
      _
    $region19: #{tpu_custom_call.1} parent=1 // pred_check_branch
      %45 = sbr.rel (0) target = $region21
    $region20: #{tpu_custom_call.1} parent=1 // pred_region
      _
    $region21: #{tpu_custom_call.1} parent=1 // pred_fallthru
      _
    // Predicated region
    $region22: #{tpu_custom_call.1} parent=1 // pred_check
      _
    $region23: #{tpu_custom_call.1} parent=1 // pred_check_branch
      %47 = sbr.rel (0) target = $region25
    $region24: #{tpu_custom_call.1} parent=1 // pred_region
      %s49 = ssub.s32 16, 16
      %50 = vsyncadd [#allocation6], %s49
      %s52 = sshll.u32 [#allocation7], 4
      %s53 = int_to_ptr.vmem [resolvable:$true] %s52
      %55 = dma.hbm_to_vmem [thread:$0]  %s5, 16, %s53, [#allocation6]
    $region25: #{tpu_custom_call.1} parent=1 // pred_fallthru
      _
    // Predicated region
    $region26: #{tpu_custom_call.1} parent=1 // pred_check
      _
    $region27: #{tpu_custom_call.1} parent=1 // pred_check_branch
      %57 = sbr.rel (0) target = $region29
    $region28: #{tpu_custom_call.1} parent=1 // pred_region
      _
    $region29: #{tpu_custom_call.1} parent=1 // pred_fallthru
      _
    // Predicated region
    $region30: #{tpu_custom_call.1} parent=1 // pred_check
      _
    $region31: #{tpu_custom_call.1} parent=1 // pred_check_branch
      %59 = sbr.rel (0) target = $region33
    $region32: #{tpu_custom_call.1} parent=1 // pred_region
      _
    $region33: #{tpu_custom_call.1} parent=1 // pred_fallthru
      _
    // Predicated region
    $region34: #{tpu_custom_call.1} parent=1 // pred_check
      _
    $region35: #{tpu_custom_call.1} parent=1 // pred_check_branch
      %61 = sbr.rel (0) target = $region37
    $region36: #{tpu_custom_call.1} parent=1 // pred_region
      %62 = dma.done [#allocation3], 64
    $region37: #{tpu_custom_call.1} parent=1 // pred_fallthru
      _
    // Predicated region
    $region38: #{tpu_custom_call.1} parent=1 // pred_check
      _
    $region39: #{tpu_custom_call.1} parent=1 // pred_check_branch
      %64 = sbr.rel (0) target = $region41
    $region40: #{tpu_custom_call.1} parent=1 // pred_region
      %65 = dma.done [#allocation6], 16
    $region41: #{tpu_custom_call.1} parent=1 // pred_fallthru
      _
    // Predicated region
    $region42: #{tpu_custom_call.1} parent=1 // pred_check
      _
    $region43: #{tpu_custom_call.1} parent=1 // pred_check_branch
      %67 = sbr.rel (0) target = $region45
    $region44: #{tpu_custom_call.1} parent=1 // pred_region
      %68 = dma.done [#allocation6], 16
    $region45: #{tpu_custom_call.1} parent=1 // pred_fallthru
      _
    %v69 = vlaneseq
    %v70 = vand.u32 %v69, 127
    %vm71 = vcmp.ge.s32.totalorder %v70, 64
    %vm72 = vcmp.lt.s32.totalorder %v70, 96
    %vm73 = vmand %vm71, %vm72
    %v74 = vsel %vm73, 2.0, 1.0
    %v75 = vld [vmem:[%s0] sm:$0xff]
    %v76 = vld [vmem:[%s0 + $0x8] sm:$0xff]
    %v77 = vld [vmem:[%s0 + $0x10] sm:$0xff]
    %v78 = vld [vmem:[%s0 + $0x18] sm:$0xff]
    %v79 = vld [vmem:[%s0 + $0x20] sm:$0xff]
    %v80 = vld [vmem:[%s0 + $0x28] sm:$0xff]
    %v81 = vld [vmem:[%s0 + $0x30] sm:$0xff]
    %v82 = vld [vmem:[%s0 + $0x38] sm:$0xff]
    %v83 = vld [vmem:[#allocation2] sm:$0xf]
    %v84 = vld [vmem:[#allocation5] sm:$0x1]
    %v86 = vlaneseq
    %v87 = vshrl.u32 %v86, 7
    %v88 = vsub.s32 0, %v87
    %v89 = vrot.slane %v84, %v88
    %vm91 = vcmask 31744
    %v93 = vsel %vm91, %v75, 0
    %v96 = vsel %vm91, %v76, 0
    %v99 = vsel %vm91, %v77, 0
    %v102 = vsel %vm91, %v78, 0
    %v105 = vsel %vm91, %v79, 0
    %v108 = vsel %vm91, %v80, 0
    %v111 = vsel %vm91, %v81, 0
    %v114 = vsel %vm91, %v82, 0
    %vm116 = vcmask 1043456
    %v118 = vsel %vm116, %v83, 0
    %120 = vmatprep.subr.mxu0 0.0
    %121 = vmatpush1.msra.mxu0 0.0
    %122 = vmatprep.subr.mxu0 0.0
    %123 = vmatpush1.msra.mxu0 0.0
    %124 = vmatprep.subr.mxu0 0.0
    %125 = vmatpush1.msra.mxu0 0.0
    %126 = vmatprep.subr.mxu0 0.0
    %127 = vmatpush1.msra.mxu0 0.0
    %128 = vmatprep.subr.mxu0 0.0
    %129 = vmatpush1.msra.mxu0 0.0
    %130 = vmatprep.subr.mxu0 0.0
    %131 = vmatpush1.msra.mxu0 0.0
    %132 = vmatprep.subr.mxu0 0.0
    %133 = vmatpush1.msra.mxu0 0.0
    %134 = vmatprep.subr.mxu0 0.0
    %135 = vmatpush1.msra.mxu0 0.0
    %136 = vmatprep.subr.mxu0 0.0
    %137 = vmatpush1.msra.mxu0 0.0
    %138 = vmatprep.subr.mxu0 0.0
    %139 = vmatpush1.msra.mxu0 0.0
    %140 = vmatprep.subr.mxu0 0.0
    %141 = vmatpush1.msra.mxu0 0.0
    %142 = vmatprep.subr.mxu0 0.0
    %143 = vmatpush1.msra.mxu0 0.0
    %144 = vmatprep.subr.mxu0 0.0
    %145 = vmatpush1.msra.mxu0 0.0
    %146 = vmatprep.subr.mxu0 0.0
    %147 = vmatpush1.msra.mxu0 0.0
    %148 = vmatprep.subr.mxu0 0.0
    %149 = vmatpush1.msra.mxu0 0.0
    %150 = vmatprep.subr.mxu0 0.0
    %151 = vmatpush1.msra.mxu0 %v118
    %152 = vmatprep.subr.mxu0 0.0
    %153 = vmatpush2.msra.mxu0 0.0
    %154 = vmatprep.subr.mxu0 0.0
    %155 = vmatpush2.msra.mxu0 0.0
    %156 = vmatprep.subr.mxu0 0.0
    %157 = vmatpush2.msra.mxu0 0.0
    %158 = vmatprep.subr.mxu0 0.0
    %159 = vmatpush2.msra.mxu0 0.0
    %160 = vmatprep.subr.mxu0 0.0
    %161 = vmatpush2.msra.mxu0 0.0
    %162 = vmatprep.subr.mxu0 0.0
    %163 = vmatpush2.msra.mxu0 0.0
    %164 = vmatprep.subr.mxu0 0.0
    %165 = vmatpush2.msra.mxu0 0.0
    %166 = vmatprep.subr.mxu0 0.0
    %167 = vmatpush2.msra.mxu0 0.0
    %168 = vmatprep.subr.mxu0 0.0
    %169 = vmatpush2.msra.mxu0 0.0
    %170 = vmatprep.subr.mxu0 0.0
    %171 = vmatpush2.msra.mxu0 0.0
    %172 = vmatprep.subr.mxu0 0.0
    %173 = vmatpush2.msra.mxu0 0.0
    %174 = vmatprep.subr.mxu0 0.0
    %175 = vmatpush2.msra.mxu0 0.0
    %176 = vmatprep.subr.mxu0 0.0
    %177 = vmatpush2.msra.mxu0 0.0
    %178 = vmatprep.subr.mxu0 0.0
    %179 = vmatpush2.msra.mxu0 0.0
    %180 = vmatprep.subr.mxu0 0.0
    %181 = vmatpush2.msra.mxu0 0.0
    %182 = vmatprep.subr.mxu0 0.0
    %183 = vmatpush2.msra.mxu0 0.0
    %184 = vmatprep.mubr.f32.mxu0 0.0
    %185 = vmatmul.mubr.f32.gmra.mxu0 %v93
    %v186 = vpop.f32.mrf.mxu0
    %v187 = vadd.f32 %v89, %v186
    %v188 = vpop.f32.mrf.mxu0
    %189 = vmatprep.mubr.f32.mxu0 0.0
    %190 = vmatmul.mubr.f32.gmra.mxu0 %v96
    %v191 = vpop.f32.mrf.mxu0
    %v192 = vadd.f32 %v89, %v191
    %v193 = vpop.f32.mrf.mxu0
    %194 = vmatprep.mubr.f32.mxu0 0.0
    %195 = vmatmul.mubr.f32.gmra.mxu0 %v99
    %v196 = vpop.f32.mrf.mxu0
    %v197 = vadd.f32 %v89, %v196
    %v198 = vpop.f32.mrf.mxu0
    %199 = vmatprep.mubr.f32.mxu0 0.0
    %200 = vmatmul.mubr.f32.gmra.mxu0 %v102
    %v201 = vpop.f32.mrf.mxu0
    %v202 = vadd.f32 %v89, %v201
    %v203 = vpop.f32.mrf.mxu0
    %204 = vmatprep.mubr.f32.mxu0 0.0
    %205 = vmatmul.mubr.f32.gmra.mxu0 %v105
    %v206 = vpop.f32.mrf.mxu0
    %v207 = vadd.f32 %v89, %v206
    %v208 = vpop.f32.mrf.mxu0
    %209 = vmatprep.mubr.f32.mxu0 0.0
    %210 = vmatmul.mubr.f32.gmra.mxu0 %v108
    %v211 = vpop.f32.mrf.mxu0
    %v212 = vadd.f32 %v89, %v211
    %v213 = vpop.f32.mrf.mxu0
    %214 = vmatprep.mubr.f32.mxu0 0.0
    %215 = vmatmul.mubr.f32.gmra.mxu0 %v111
    %v216 = vpop.f32.mrf.mxu0
    %v217 = vadd.f32 %v89, %v216
    %v218 = vpop.f32.mrf.mxu0
    %219 = vmatprep.mubr.f32.mxu0 0.0
    %220 = vmatmul.mubr.f32.gmra.mxu0 %v114
    %v221 = vpop.f32.mrf.mxu0
    %v222 = vadd.f32 %v89, %v221
    %v223 = vpop.f32.mrf.mxu0
    %224 = vdwg.mxu0
    %v225 = vmul.f32 %v187, %v74
    %v226 = vmul.f32 %v192, %v74
    %v227 = vmul.f32 %v197, %v74
    %v228 = vmul.f32 %v202, %v74
    %v229 = vmul.f32 %v207, %v74
    %v230 = vmul.f32 %v212, %v74
    %v231 = vmul.f32 %v217, %v74
    %v232 = vmul.f32 %v222, %v74
    %v233 = vld [vmem:[%s2] sm:$0xff]
    %v234 = vld [vmem:[%s2 + $0x8] sm:$0xff]
    %v235 = vld [vmem:[%s2 + $0x10] sm:$0xff]
    %v236 = vld [vmem:[%s2 + $0x18] sm:$0xff]
    %v237 = vmul.f32 %v233, %v74
    %v238 = vmul.f32 %v234, %v74
    %v239 = vmul.f32 %v235, %v74
    %v240 = vmul.f32 %v236, %v74
    %v241 = vld [vmem:[%s6] sm:$0xff]
    %v242 = vld [vmem:[%s7] sm:$0xff]
    %vm243 = vcmask 261120
    %v245 = vsel %vm243, %v241, 0
    %247 = vmatprep.subr.mxu0 0.0
    %248 = vmatpush1.msra.mxu0 0.0
    %249 = vmatprep.subr.mxu0 0.0
    %250 = vmatpush1.msra.mxu0 0.0
    %251 = vmatprep.subr.mxu0 0.0
    %252 = vmatpush1.msra.mxu0 0.0
    %253 = vmatprep.subr.mxu0 0.0
    %254 = vmatpush1.msra.mxu0 0.0
    %255 = vmatprep.subr.mxu0 0.0
    %256 = vmatpush1.msra.mxu0 0.0
    %257 = vmatprep.subr.mxu0 0.0
    %258 = vmatpush1.msra.mxu0 0.0
    %259 = vmatprep.subr.mxu0 0.0
    %260 = vmatpush1.msra.mxu0 0.0
    %261 = vmatprep.subr.mxu0 0.0
    %262 = vmatpush1.msra.mxu0 0.0
    %263 = vmatprep.subr.mxu0 0.0
    %264 = vmatpush1.msra.mxu0 0.0
    %265 = vmatprep.subr.mxu0 0.0
    %266 = vmatpush1.msra.mxu0 0.0
    %267 = vmatprep.subr.mxu0 0.0
    %268 = vmatpush1.msra.mxu0 0.0
    %269 = vmatprep.subr.mxu0 0.0
    %270 = vmatpush1.msra.mxu0 0.0
    %271 = vmatprep.subr.mxu0 0.0
    %272 = vmatpush1.msra.mxu0 %v240
    %273 = vmatprep.subr.mxu0 0.0
    %274 = vmatpush1.msra.mxu0 %v239
    %275 = vmatprep.subr.mxu0 0.0
    %276 = vmatpush1.msra.mxu0 %v238
    %277 = vmatprep.subr.mxu0 0.0
    %278 = vmatpush1.msra.mxu0 %v237
    %279 = vmatprep.subr.mxu0 0.0
    %280 = vmatpush2.msra.mxu0 0.0
    %281 = vmatprep.subr.mxu0 0.0
    %282 = vmatpush2.msra.mxu0 0.0
    %283 = vmatprep.subr.mxu0 0.0
    %284 = vmatpush2.msra.mxu0 0.0
    %285 = vmatprep.subr.mxu0 0.0
    %286 = vmatpush2.msra.mxu0 0.0
    %287 = vmatprep.subr.mxu0 0.0
    %288 = vmatpush2.msra.mxu0 0.0
    %289 = vmatprep.subr.mxu0 0.0
    %290 = vmatpush2.msra.mxu0 0.0
    %291 = vmatprep.subr.mxu0 0.0
    %292 = vmatpush2.msra.mxu0 0.0
    %293 = vmatprep.subr.mxu0 0.0
    %294 = vmatpush2.msra.mxu0 0.0
    %295 = vmatprep.subr.mxu0 0.0
    %296 = vmatpush2.msra.mxu0 0.0
    %297 = vmatprep.subr.mxu0 0.0
    %298 = vmatpush2.msra.mxu0 0.0
    %299 = vmatprep.subr.mxu0 0.0
    %300 = vmatpush2.msra.mxu0 0.0
    %301 = vmatprep.subr.mxu0 0.0
    %302 = vmatpush2.msra.mxu0 0.0
    %303 = vmatprep.subr.mxu0 0.0
    %304 = vmatpush2.msra.mxu0 0.0
    %305 = vmatprep.subr.mxu0 0.0
    %306 = vmatpush2.msra.mxu0 0.0
    %307 = vmatprep.subr.mxu0 0.0
    %308 = vmatpush2.msra.mxu0 0.0
    %309 = vmatprep.subr.mxu0 0.0
    %310 = vmatpush2.msra.mxu0 0.0
    %311 = vmatprep.mubr.f32.mxu0 0.0
    %312 = vmatmul.mubr.f32.gmra.mxu0 %v245
    %v313 = vpop.f32.mrf.mxu0
    %v314 = vadd.f32 0.0, %v313
    %v315 = vpop.f32.mrf.mxu0
    %316 = vdwg.mxu0
    %v317 = vadd.f32 %v225, %v314
    %v318 = vxor.u32 %v317, 2147483648
    %v319 = vmul.f32 %v318, 1.442695
    %v320 = vpow.pop %v319
    %v321 = vadd.f32 %v320, 1.0
    %v322 = vrcp.pop %v321
    %v323 = vmul.f32 1.0, %v322
    %v324 = vmul.f32 %v323, 2.0
    %v325 = vsub.f32 %v324, 1.0
    %327 = vrot.lane.b32.xlu0 %v242, 32
    %v328 = vpop.permute.xlu0 %327
    %v330 = vmul.f32 %v323, %v328
    %332 = vrot.lane.b32.xlu0 %v325, 64
    %v333 = vpop.permute.xlu0 %332
    %v335 = vmul.f32 %v323, %v333
    %337 = vrot.lane.b32.xlu0 %v335, 32
    %v338 = vpop.permute.xlu0 %337
    %v340 = vadd.f32 %v330, %v338
    %v341 = vtanh.pop %v340
    %343 = vrot.lane.b32.xlu0 %v341, 64
    %v344 = vpop.permute.xlu0 %343
    %v346 = vmul.f32 %v323, %v344
    %348 = vrot.lane.b32.xlu0 %v346, 32
    %v349 = vpop.permute.xlu0 %348
    %v350 = vsel %vm243, %v349, 0
    %352 = vmatprep.subr.mxu0 0.0
    %353 = vmatpush1.msra.mxu0 0.0
    %354 = vmatprep.subr.mxu0 0.0
    %355 = vmatpush1.msra.mxu0 0.0
    %356 = vmatprep.subr.mxu0 0.0
    %357 = vmatpush1.msra.mxu0 0.0
    %358 = vmatprep.subr.mxu0 0.0
    %359 = vmatpush1.msra.mxu0 0.0
    %360 = vmatprep.subr.mxu0 0.0
    %361 = vmatpush1.msra.mxu0 0.0
    %362 = vmatprep.subr.mxu0 0.0
    %363 = vmatpush1.msra.mxu0 0.0
    %364 = vmatprep.subr.mxu0 0.0
    %365 = vmatpush1.msra.mxu0 0.0
    %366 = vmatprep.subr.mxu0 0.0
    %367 = vmatpush1.msra.mxu0 0.0
    %368 = vmatprep.subr.mxu0 0.0
    %369 = vmatpush1.msra.mxu0 0.0
    %370 = vmatprep.subr.mxu0 0.0
    %371 = vmatpush1.msra.mxu0 0.0
    %372 = vmatprep.subr.mxu0 0.0
    %373 = vmatpush1.msra.mxu0 0.0
    %374 = vmatprep.subr.mxu0 0.0
    %375 = vmatpush1.msra.mxu0 0.0
    %376 = vmatprep.subr.mxu0 0.0
    %377 = vmatpush1.msra.mxu0 %v240
    %378 = vmatprep.subr.mxu0 0.0
    %379 = vmatpush1.msra.mxu0 %v239
    %380 = vmatprep.subr.mxu0 0.0
    %381 = vmatpush1.msra.mxu0 %v238
    %382 = vmatprep.subr.mxu0 0.0
    %383 = vmatpush1.msra.mxu0 %v237
    %384 = vmatprep.subr.mxu0 0.0
    %385 = vmatpush2.msra.mxu0 0.0
    %386 = vmatprep.subr.mxu0 0.0
    %387 = vmatpush2.msra.mxu0 0.0
    %388 = vmatprep.subr.mxu0 0.0
    %389 = vmatpush2.msra.mxu0 0.0
    %390 = vmatprep.subr.mxu0 0.0
    %391 = vmatpush2.msra.mxu0 0.0
    %392 = vmatprep.subr.mxu0 0.0
    %393 = vmatpush2.msra.mxu0 0.0
    %394 = vmatprep.subr.mxu0 0.0
    %395 = vmatpush2.msra.mxu0 0.0
    %396 = vmatprep.subr.mxu0 0.0
    %397 = vmatpush2.msra.mxu0 0.0
    %398 = vmatprep.subr.mxu0 0.0
    %399 = vmatpush2.msra.mxu0 0.0
    %400 = vmatprep.subr.mxu0 0.0
    %401 = vmatpush2.msra.mxu0 0.0
    %402 = vmatprep.subr.mxu0 0.0
    %403 = vmatpush2.msra.mxu0 0.0
    %404 = vmatprep.subr.mxu0 0.0
    %405 = vmatpush2.msra.mxu0 0.0
    %406 = vmatprep.subr.mxu0 0.0
    %407 = vmatpush2.msra.mxu0 0.0
    %408 = vmatprep.subr.mxu0 0.0
    %409 = vmatpush2.msra.mxu0 0.0
    %410 = vmatprep.subr.mxu0 0.0
    %411 = vmatpush2.msra.mxu0 0.0
    %412 = vmatprep.subr.mxu0 0.0
    %413 = vmatpush2.msra.mxu0 0.0
    %414 = vmatprep.subr.mxu0 0.0
    %415 = vmatpush2.msra.mxu0 0.0
    %416 = vmatprep.mubr.f32.mxu0 0.0
    %417 = vmatmul.mubr.f32.gmra.mxu0 %v350
    %v418 = vpop.f32.mrf.mxu0
    %v419 = vadd.f32 0.0, %v418
    %v420 = vpop.f32.mrf.mxu0
    %421 = vdwg.mxu0
    %v422 = vadd.f32 %v226, %v419
    %v423 = vxor.u32 %v422, 2147483648
    %v424 = vmul.f32 %v423, 1.442695
    %v425 = vpow.pop %v424
    %v426 = vadd.f32 %v425, 1.0
    %v427 = vrcp.pop %v426
    %v428 = vmul.f32 1.0, %v427
    %v429 = vmul.f32 %v428, 2.0
    %v430 = vsub.f32 %v429, 1.0
    %v431 = vmul.f32 %v428, %v340
    %433 = vrot.lane.b32.xlu0 %v430, 64
    %v434 = vpop.permute.xlu0 %433
    %v436 = vmul.f32 %v428, %v434
    %438 = vrot.lane.b32.xlu0 %v436, 32
    %v439 = vpop.permute.xlu0 %438
    %v441 = vadd.f32 %v431, %v439
    %v442 = vtanh.pop %v441
    %444 = vrot.lane.b32.xlu0 %v442, 64
    %v445 = vpop.permute.xlu0 %444
    %v447 = vmul.f32 %v428, %v445
    %449 = vrot.lane.b32.xlu0 %v447, 32
    %v450 = vpop.permute.xlu0 %449
    %v451 = vsel %vm243, %v450, 0
    %453 = vmatprep.subr.mxu0 0.0
    %454 = vmatpush1.msra.mxu0 0.0
    %455 = vmatprep.subr.mxu0 0.0
    %456 = vmatpush1.msra.mxu0 0.0
    %457 = vmatprep.subr.mxu0 0.0
    %458 = vmatpush1.msra.mxu0 0.0
    %459 = vmatprep.subr.mxu0 0.0
    %460 = vmatpush1.msra.mxu0 0.0
    %461 = vmatprep.subr.mxu0 0.0
    %462 = vmatpush1.msra.mxu0 0.0
    %463 = vmatprep.subr.mxu0 0.0
    %464 = vmatpush1.msra.mxu0 0.0
    %465 = vmatprep.subr.mxu0 0.0
    %466 = vmatpush1.msra.mxu0 0.0
    %467 = vmatprep.subr.mxu0 0.0
    %468 = vmatpush1.msra.mxu0 0.0
    %469 = vmatprep.subr.mxu0 0.0
    %470 = vmatpush1.msra.mxu0 0.0
    %471 = vmatprep.subr.mxu0 0.0
    %472 = vmatpush1.msra.mxu0 0.0
    %473 = vmatprep.subr.mxu0 0.0
    %474 = vmatpush1.msra.mxu0 0.0
    %475 = vmatprep.subr.mxu0 0.0
    %476 = vmatpush1.msra.mxu0 0.0
    %477 = vmatprep.subr.mxu0 0.0
    %478 = vmatpush1.msra.mxu0 %v240
    %479 = vmatprep.subr.mxu0 0.0
    %480 = vmatpush1.msra.mxu0 %v239
    %481 = vmatprep.subr.mxu0 0.0
    %482 = vmatpush1.msra.mxu0 %v238
    %483 = vmatprep.subr.mxu0 0.0
    %484 = vmatpush1.msra.mxu0 %v237
    %485 = vmatprep.subr.mxu0 0.0
    %486 = vmatpush2.msra.mxu0 0.0
    %487 = vmatprep.subr.mxu0 0.0
    %488 = vmatpush2.msra.mxu0 0.0
    %489 = vmatprep.subr.mxu0 0.0
    %490 = vmatpush2.msra.mxu0 0.0
    %491 = vmatprep.subr.mxu0 0.0
    %492 = vmatpush2.msra.mxu0 0.0
    %493 = vmatprep.subr.mxu0 0.0
    %494 = vmatpush2.msra.mxu0 0.0
    %495 = vmatprep.subr.mxu0 0.0
    %496 = vmatpush2.msra.mxu0 0.0
    %497 = vmatprep.subr.mxu0 0.0
    %498 = vmatpush2.msra.mxu0 0.0
    %499 = vmatprep.subr.mxu0 0.0
    %500 = vmatpush2.msra.mxu0 0.0
    %501 = vmatprep.subr.mxu0 0.0
    %502 = vmatpush2.msra.mxu0 0.0
    %503 = vmatprep.subr.mxu0 0.0
    %504 = vmatpush2.msra.mxu0 0.0
    %505 = vmatprep.subr.mxu0 0.0
    %506 = vmatpush2.msra.mxu0 0.0
    %507 = vmatprep.subr.mxu0 0.0
    %508 = vmatpush2.msra.mxu0 0.0
    %509 = vmatprep.subr.mxu0 0.0
    %510 = vmatpush2.msra.mxu0 0.0
    %511 = vmatprep.subr.mxu0 0.0
    %512 = vmatpush2.msra.mxu0 0.0
    %513 = vmatprep.subr.mxu0 0.0
    %514 = vmatpush2.msra.mxu0 0.0
    %515 = vmatprep.subr.mxu0 0.0
    %516 = vmatpush2.msra.mxu0 0.0
    %517 = vmatprep.mubr.f32.mxu0 0.0
    %518 = vmatmul.mubr.f32.gmra.mxu0 %v451
    %v519 = vpop.f32.mrf.mxu0
    %v520 = vadd.f32 0.0, %v519
    %v521 = vpop.f32.mrf.mxu0
    %522 = vdwg.mxu0
    %v523 = vadd.f32 %v227, %v520
    %v524 = vxor.u32 %v523, 2147483648
    %v525 = vmul.f32 %v524, 1.442695
    %v526 = vpow.pop %v525
    %v527 = vadd.f32 %v526, 1.0
    %v528 = vrcp.pop %v527
    %v529 = vmul.f32 1.0, %v528
    %v530 = vmul.f32 %v529, 2.0
    %v531 = vsub.f32 %v530, 1.0
    %v532 = vmul.f32 %v529, %v441
    %534 = vrot.lane.b32.xlu0 %v531, 64
    %v535 = vpop.permute.xlu0 %534
    %v537 = vmul.f32 %v529, %v535
    %539 = vrot.lane.b32.xlu0 %v537, 32
    %v540 = vpop.permute.xlu0 %539
    %v542 = vadd.f32 %v532, %v540
    %v543 = vtanh.pop %v542
    %545 = vrot.lane.b32.xlu0 %v543, 64
    %v546 = vpop.permute.xlu0 %545
    %v548 = vmul.f32 %v529, %v546
    %550 = vrot.lane.b32.xlu0 %v548, 32
    %v551 = vpop.permute.xlu0 %550
    %v552 = vsel %vm243, %v551, 0
    %554 = vmatprep.subr.mxu0 0.0
    %555 = vmatpush1.msra.mxu0 0.0
    %556 = vmatprep.subr.mxu0 0.0
    %557 = vmatpush1.msra.mxu0 0.0
    %558 = vmatprep.subr.mxu0 0.0
    %559 = vmatpush1.msra.mxu0 0.0
    %560 = vmatprep.subr.mxu0 0.0
    %561 = vmatpush1.msra.mxu0 0.0
    %562 = vmatprep.subr.mxu0 0.0
    %563 = vmatpush1.msra.mxu0 0.0
    %564 = vmatprep.subr.mxu0 0.0
    %565 = vmatpush1.msra.mxu0 0.0
    %566 = vmatprep.subr.mxu0 0.0
    %567 = vmatpush1.msra.mxu0 0.0
    %568 = vmatprep.subr.mxu0 0.0
    %569 = vmatpush1.msra.mxu0 0.0
    %570 = vmatprep.subr.mxu0 0.0
    %571 = vmatpush1.msra.mxu0 0.0
    %572 = vmatprep.subr.mxu0 0.0
    %573 = vmatpush1.msra.mxu0 0.0
    %574 = vmatprep.subr.mxu0 0.0
    %575 = vmatpush1.msra.mxu0 0.0
    %576 = vmatprep.subr.mxu0 0.0
    %577 = vmatpush1.msra.mxu0 0.0
    %578 = vmatprep.subr.mxu0 0.0
    %579 = vmatpush1.msra.mxu0 %v240
    %580 = vmatprep.subr.mxu0 0.0
    %581 = vmatpush1.msra.mxu0 %v239
    %582 = vmatprep.subr.mxu0 0.0
    %583 = vmatpush1.msra.mxu0 %v238
    %584 = vmatprep.subr.mxu0 0.0
    %585 = vmatpush1.msra.mxu0 %v237
    %586 = vmatprep.subr.mxu0 0.0
    %587 = vmatpush2.msra.mxu0 0.0
    %588 = vmatprep.subr.mxu0 0.0
    %589 = vmatpush2.msra.mxu0 0.0
    %590 = vmatprep.subr.mxu0 0.0
    %591 = vmatpush2.msra.mxu0 0.0
    %592 = vmatprep.subr.mxu0 0.0
    %593 = vmatpush2.msra.mxu0 0.0
    %594 = vmatprep.subr.mxu0 0.0
    %595 = vmatpush2.msra.mxu0 0.0
    %596 = vmatprep.subr.mxu0 0.0
    %597 = vmatpush2.msra.mxu0 0.0
    %598 = vmatprep.subr.mxu0 0.0
    %599 = vmatpush2.msra.mxu0 0.0
    %600 = vmatprep.subr.mxu0 0.0
    %601 = vmatpush2.msra.mxu0 0.0
    %602 = vmatprep.subr.mxu0 0.0
    %603 = vmatpush2.msra.mxu0 0.0
    %604 = vmatprep.subr.mxu0 0.0
    %605 = vmatpush2.msra.mxu0 0.0
    %606 = vmatprep.subr.mxu0 0.0
    %607 = vmatpush2.msra.mxu0 0.0
    %608 = vmatprep.subr.mxu0 0.0
    %609 = vmatpush2.msra.mxu0 0.0
    %610 = vmatprep.subr.mxu0 0.0
    %611 = vmatpush2.msra.mxu0 0.0
    %612 = vmatprep.subr.mxu0 0.0
    %613 = vmatpush2.msra.mxu0 0.0
    %614 = vmatprep.subr.mxu0 0.0
    %615 = vmatpush2.msra.mxu0 0.0
    %616 = vmatprep.subr.mxu0 0.0
    %617 = vmatpush2.msra.mxu0 0.0
    %618 = vmatprep.mubr.f32.mxu0 0.0
    %619 = vmatmul.mubr.f32.gmra.mxu0 %v552
    %v620 = vpop.f32.mrf.mxu0
    %v621 = vadd.f32 0.0, %v620
    %v622 = vpop.f32.mrf.mxu0
    %623 = vdwg.mxu0
    %v624 = vadd.f32 %v228, %v621
    %v625 = vxor.u32 %v624, 2147483648
    %v626 = vmul.f32 %v625, 1.442695
    %v627 = vpow.pop %v626
    %v628 = vadd.f32 %v627, 1.0
    %v629 = vrcp.pop %v628
    %v630 = vmul.f32 1.0, %v629
    %v631 = vmul.f32 %v630, 2.0
    %v632 = vsub.f32 %v631, 1.0
    %v633 = vmul.f32 %v630, %v542
    %635 = vrot.lane.b32.xlu0 %v632, 64
    %v636 = vpop.permute.xlu0 %635
    %v638 = vmul.f32 %v630, %v636
    %640 = vrot.lane.b32.xlu0 %v638, 32
    %v641 = vpop.permute.xlu0 %640
    %v643 = vadd.f32 %v633, %v641
    %v644 = vtanh.pop %v643
    %646 = vrot.lane.b32.xlu0 %v644, 64
    %v647 = vpop.permute.xlu0 %646
    %v649 = vmul.f32 %v630, %v647
    %651 = vrot.lane.b32.xlu0 %v649, 32
    %v652 = vpop.permute.xlu0 %651
    %v653 = vsel %vm243, %v652, 0
    %655 = vmatprep.subr.mxu0 0.0
    %656 = vmatpush1.msra.mxu0 0.0
    %657 = vmatprep.subr.mxu0 0.0
    %658 = vmatpush1.msra.mxu0 0.0
    %659 = vmatprep.subr.mxu0 0.0
    %660 = vmatpush1.msra.mxu0 0.0
    %661 = vmatprep.subr.mxu0 0.0
    %662 = vmatpush1.msra.mxu0 0.0
    %663 = vmatprep.subr.mxu0 0.0
    %664 = vmatpush1.msra.mxu0 0.0
    %665 = vmatprep.subr.mxu0 0.0
    %666 = vmatpush1.msra.mxu0 0.0
    %667 = vmatprep.subr.mxu0 0.0
    %668 = vmatpush1.msra.mxu0 0.0
    %669 = vmatprep.subr.mxu0 0.0
    %670 = vmatpush1.msra.mxu0 0.0
    %671 = vmatprep.subr.mxu0 0.0
    %672 = vmatpush1.msra.mxu0 0.0
    %673 = vmatprep.subr.mxu0 0.0
    %674 = vmatpush1.msra.mxu0 0.0
    %675 = vmatprep.subr.mxu0 0.0
    %676 = vmatpush1.msra.mxu0 0.0
    %677 = vmatprep.subr.mxu0 0.0
    %678 = vmatpush1.msra.mxu0 0.0
    %679 = vmatprep.subr.mxu0 0.0
    %680 = vmatpush1.msra.mxu0 %v240
    %681 = vmatprep.subr.mxu0 0.0
    %682 = vmatpush1.msra.mxu0 %v239
    %683 = vmatprep.subr.mxu0 0.0
    %684 = vmatpush1.msra.mxu0 %v238
    %685 = vmatprep.subr.mxu0 0.0
    %686 = vmatpush1.msra.mxu0 %v237
    %687 = vmatprep.subr.mxu0 0.0
    %688 = vmatpush2.msra.mxu0 0.0
    %689 = vmatprep.subr.mxu0 0.0
    %690 = vmatpush2.msra.mxu0 0.0
    %691 = vmatprep.subr.mxu0 0.0
    %692 = vmatpush2.msra.mxu0 0.0
    %693 = vmatprep.subr.mxu0 0.0
    %694 = vmatpush2.msra.mxu0 0.0
    %695 = vmatprep.subr.mxu0 0.0
    %696 = vmatpush2.msra.mxu0 0.0
    %697 = vmatprep.subr.mxu0 0.0
    %698 = vmatpush2.msra.mxu0 0.0
    %699 = vmatprep.subr.mxu0 0.0
    %700 = vmatpush2.msra.mxu0 0.0
    %701 = vmatprep.subr.mxu0 0.0
    %702 = vmatpush2.msra.mxu0 0.0
    %703 = vmatprep.subr.mxu0 0.0
    %704 = vmatpush2.msra.mxu0 0.0
    %705 = vmatprep.subr.mxu0 0.0
    %706 = vmatpush2.msra.mxu0 0.0
    %707 = vmatprep.subr.mxu0 0.0
    %708 = vmatpush2.msra.mxu0 0.0
    %709 = vmatprep.subr.mxu0 0.0
    %710 = vmatpush2.msra.mxu0 0.0
    %711 = vmatprep.subr.mxu0 0.0
    %712 = vmatpush2.msra.mxu0 0.0
    %713 = vmatprep.subr.mxu0 0.0
    %714 = vmatpush2.msra.mxu0 0.0
    %715 = vmatprep.subr.mxu0 0.0
    %716 = vmatpush2.msra.mxu0 0.0
    %717 = vmatprep.subr.mxu0 0.0
    %718 = vmatpush2.msra.mxu0 0.0
    %719 = vmatprep.mubr.f32.mxu0 0.0
    %720 = vmatmul.mubr.f32.gmra.mxu0 %v653
    %v721 = vpop.f32.mrf.mxu0
    %v722 = vadd.f32 0.0, %v721
    %v723 = vpop.f32.mrf.mxu0
    %724 = vdwg.mxu0
    %v725 = vadd.f32 %v229, %v722
    %v726 = vxor.u32 %v725, 2147483648
    %v727 = vmul.f32 %v726, 1.442695
    %v728 = vpow.pop %v727
    %v729 = vadd.f32 %v728, 1.0
    %v730 = vrcp.pop %v729
    %v731 = vmul.f32 1.0, %v730
    %v732 = vmul.f32 %v731, 2.0
    %v733 = vsub.f32 %v732, 1.0
    %v734 = vmul.f32 %v731, %v643
    %736 = vrot.lane.b32.xlu0 %v733, 64
    %v737 = vpop.permute.xlu0 %736
    %v739 = vmul.f32 %v731, %v737
    %741 = vrot.lane.b32.xlu0 %v739, 32
    %v742 = vpop.permute.xlu0 %741
    %v744 = vadd.f32 %v734, %v742
    %v745 = vtanh.pop %v744
    %747 = vrot.lane.b32.xlu0 %v745, 64
    %v748 = vpop.permute.xlu0 %747
    %v750 = vmul.f32 %v731, %v748
    %752 = vrot.lane.b32.xlu0 %v750, 32
    %v753 = vpop.permute.xlu0 %752
    %v754 = vsel %vm243, %v753, 0
    %756 = vmatprep.subr.mxu0 0.0
    %757 = vmatpush1.msra.mxu0 0.0
    %758 = vmatprep.subr.mxu0 0.0
    %759 = vmatpush1.msra.mxu0 0.0
    %760 = vmatprep.subr.mxu0 0.0
    %761 = vmatpush1.msra.mxu0 0.0
    %762 = vmatprep.subr.mxu0 0.0
    %763 = vmatpush1.msra.mxu0 0.0
    %764 = vmatprep.subr.mxu0 0.0
    %765 = vmatpush1.msra.mxu0 0.0
    %766 = vmatprep.subr.mxu0 0.0
    %767 = vmatpush1.msra.mxu0 0.0
    %768 = vmatprep.subr.mxu0 0.0
    %769 = vmatpush1.msra.mxu0 0.0
    %770 = vmatprep.subr.mxu0 0.0
    %771 = vmatpush1.msra.mxu0 0.0
    %772 = vmatprep.subr.mxu0 0.0
    %773 = vmatpush1.msra.mxu0 0.0
    %774 = vmatprep.subr.mxu0 0.0
    %775 = vmatpush1.msra.mxu0 0.0
    %776 = vmatprep.subr.mxu0 0.0
    %777 = vmatpush1.msra.mxu0 0.0
    %778 = vmatprep.subr.mxu0 0.0
    %779 = vmatpush1.msra.mxu0 0.0
    %780 = vmatprep.subr.mxu0 0.0
    %781 = vmatpush1.msra.mxu0 %v240
    %782 = vmatprep.subr.mxu0 0.0
    %783 = vmatpush1.msra.mxu0 %v239
    %784 = vmatprep.subr.mxu0 0.0
    %785 = vmatpush1.msra.mxu0 %v238
    %786 = vmatprep.subr.mxu0 0.0
    %787 = vmatpush1.msra.mxu0 %v237
    %788 = vmatprep.subr.mxu0 0.0
    %789 = vmatpush2.msra.mxu0 0.0
    %790 = vmatprep.subr.mxu0 0.0
    %791 = vmatpush2.msra.mxu0 0.0
    %792 = vmatprep.subr.mxu0 0.0
    %793 = vmatpush2.msra.mxu0 0.0
    %794 = vmatprep.subr.mxu0 0.0
    %795 = vmatpush2.msra.mxu0 0.0
    %796 = vmatprep.subr.mxu0 0.0
    %797 = vmatpush2.msra.mxu0 0.0
    %798 = vmatprep.subr.mxu0 0.0
    %799 = vmatpush2.msra.mxu0 0.0
    %800 = vmatprep.subr.mxu0 0.0
    %801 = vmatpush2.msra.mxu0 0.0
    %802 = vmatprep.subr.mxu0 0.0
    %803 = vmatpush2.msra.mxu0 0.0
    %804 = vmatprep.subr.mxu0 0.0
    %805 = vmatpush2.msra.mxu0 0.0
    %806 = vmatprep.subr.mxu0 0.0
    %807 = vmatpush2.msra.mxu0 0.0
    %808 = vmatprep.subr.mxu0 0.0
    %809 = vmatpush2.msra.mxu0 0.0
    %810 = vmatprep.subr.mxu0 0.0
    %811 = vmatpush2.msra.mxu0 0.0
    %812 = vmatprep.subr.mxu0 0.0
    %813 = vmatpush2.msra.mxu0 0.0
    %814 = vmatprep.subr.mxu0 0.0
    %815 = vmatpush2.msra.mxu0 0.0
    %816 = vmatprep.subr.mxu0 0.0
    %817 = vmatpush2.msra.mxu0 0.0
    %818 = vmatprep.subr.mxu0 0.0
    %819 = vmatpush2.msra.mxu0 0.0
    %820 = vmatprep.mubr.f32.mxu0 0.0
    %821 = vmatmul.mubr.f32.gmra.mxu0 %v754
    %v822 = vpop.f32.mrf.mxu0
    %v823 = vadd.f32 0.0, %v822
    %v824 = vpop.f32.mrf.mxu0
    %825 = vdwg.mxu0
    %v826 = vadd.f32 %v230, %v823
    %v827 = vxor.u32 %v826, 2147483648
    %v828 = vmul.f32 %v827, 1.442695
    %v829 = vpow.pop %v828
    %v830 = vadd.f32 %v829, 1.0
    %v831 = vrcp.pop %v830
    %v832 = vmul.f32 1.0, %v831
    %v833 = vmul.f32 %v832, 2.0
    %v834 = vsub.f32 %v833, 1.0
    %v835 = vmul.f32 %v832, %v744
    %837 = vrot.lane.b32.xlu0 %v834, 64
    %v838 = vpop.permute.xlu0 %837
    %v840 = vmul.f32 %v832, %v838
    %842 = vrot.lane.b32.xlu0 %v840, 32
    %v843 = vpop.permute.xlu0 %842
    %v845 = vadd.f32 %v835, %v843
    %v846 = vtanh.pop %v845
    %848 = vrot.lane.b32.xlu0 %v846, 64
    %v849 = vpop.permute.xlu0 %848
    %v851 = vmul.f32 %v832, %v849
    %853 = vrot.lane.b32.xlu0 %v851, 32
    %v854 = vpop.permute.xlu0 %853
    %v855 = vsel %vm243, %v854, 0
    %857 = vmatprep.subr.mxu0 0.0
    %858 = vmatpush1.msra.mxu0 0.0
    %859 = vmatprep.subr.mxu0 0.0
    %860 = vmatpush1.msra.mxu0 0.0
    %861 = vmatprep.subr.mxu0 0.0
    %862 = vmatpush1.msra.mxu0 0.0
    %863 = vmatprep.subr.mxu0 0.0
    %864 = vmatpush1.msra.mxu0 0.0
    %865 = vmatprep.subr.mxu0 0.0
    %866 = vmatpush1.msra.mxu0 0.0
    %867 = vmatprep.subr.mxu0 0.0
    %868 = vmatpush1.msra.mxu0 0.0
    %869 = vmatprep.subr.mxu0 0.0
    %870 = vmatpush1.msra.mxu0 0.0
    %871 = vmatprep.subr.mxu0 0.0
    %872 = vmatpush1.msra.mxu0 0.0
    %873 = vmatprep.subr.mxu0 0.0
    %874 = vmatpush1.msra.mxu0 0.0
    %875 = vmatprep.subr.mxu0 0.0
    %876 = vmatpush1.msra.mxu0 0.0
    %877 = vmatprep.subr.mxu0 0.0
    %878 = vmatpush1.msra.mxu0 0.0
    %879 = vmatprep.subr.mxu0 0.0
    %880 = vmatpush1.msra.mxu0 0.0
    %881 = vmatprep.subr.mxu0 0.0
    %882 = vmatpush1.msra.mxu0 %v240
    %883 = vmatprep.subr.mxu0 0.0
    %884 = vmatpush1.msra.mxu0 %v239
    %885 = vmatprep.subr.mxu0 0.0
    %886 = vmatpush1.msra.mxu0 %v238
    %887 = vmatprep.subr.mxu0 0.0
    %888 = vmatpush1.msra.mxu0 %v237
    %889 = vmatprep.subr.mxu0 0.0
    %890 = vmatpush2.msra.mxu0 0.0
    %891 = vmatprep.subr.mxu0 0.0
    %892 = vmatpush2.msra.mxu0 0.0
    %893 = vmatprep.subr.mxu0 0.0
    %894 = vmatpush2.msra.mxu0 0.0
    %895 = vmatprep.subr.mxu0 0.0
    %896 = vmatpush2.msra.mxu0 0.0
    %897 = vmatprep.subr.mxu0 0.0
    %898 = vmatpush2.msra.mxu0 0.0
    %899 = vmatprep.subr.mxu0 0.0
    %900 = vmatpush2.msra.mxu0 0.0
    %901 = vmatprep.subr.mxu0 0.0
    %902 = vmatpush2.msra.mxu0 0.0
    %903 = vmatprep.subr.mxu0 0.0
    %904 = vmatpush2.msra.mxu0 0.0
    %905 = vmatprep.subr.mxu0 0.0
    %906 = vmatpush2.msra.mxu0 0.0
    %907 = vmatprep.subr.mxu0 0.0
    %908 = vmatpush2.msra.mxu0 0.0
    %909 = vmatprep.subr.mxu0 0.0
    %910 = vmatpush2.msra.mxu0 0.0
    %911 = vmatprep.subr.mxu0 0.0
    %912 = vmatpush2.msra.mxu0 0.0
    %913 = vmatprep.subr.mxu0 0.0
    %914 = vmatpush2.msra.mxu0 0.0
    %915 = vmatprep.subr.mxu0 0.0
    %916 = vmatpush2.msra.mxu0 0.0
    %917 = vmatprep.subr.mxu0 0.0
    %918 = vmatpush2.msra.mxu0 0.0
    %919 = vmatprep.subr.mxu0 0.0
    %920 = vmatpush2.msra.mxu0 0.0
    %921 = vmatprep.mubr.f32.mxu0 0.0
    %922 = vmatmul.mubr.f32.gmra.mxu0 %v855
    %v923 = vpop.f32.mrf.mxu0
    %v924 = vadd.f32 0.0, %v923
    %v925 = vpop.f32.mrf.mxu0
    %926 = vdwg.mxu0
    %v927 = vadd.f32 %v231, %v924
    %v928 = vxor.u32 %v927, 2147483648
    %v929 = vmul.f32 %v928, 1.442695
    %v930 = vpow.pop %v929
    %v931 = vadd.f32 %v930, 1.0
    %v932 = vrcp.pop %v931
    %v933 = vmul.f32 1.0, %v932
    %v934 = vmul.f32 %v933, 2.0
    %v935 = vsub.f32 %v934, 1.0
    %v936 = vmul.f32 %v933, %v845
    %938 = vrot.lane.b32.xlu0 %v935, 64
    %v939 = vpop.permute.xlu0 %938
    %v941 = vmul.f32 %v933, %v939
    %943 = vrot.lane.b32.xlu0 %v941, 32
    %v944 = vpop.permute.xlu0 %943
    %v946 = vadd.f32 %v936, %v944
    %v947 = vtanh.pop %v946
    %949 = vrot.lane.b32.xlu0 %v947, 64
    %v950 = vpop.permute.xlu0 %949
    %v952 = vmul.f32 %v933, %v950
    %954 = vrot.lane.b32.xlu0 %v952, 32
    %v955 = vpop.permute.xlu0 %954
    %v956 = vsel %vm243, %v955, 0
    %958 = vmatprep.subr.mxu0 0.0
    %959 = vmatpush1.msra.mxu0 0.0
    %960 = vmatprep.subr.mxu0 0.0
    %961 = vmatpush1.msra.mxu0 0.0
    %962 = vmatprep.subr.mxu0 0.0
    %963 = vmatpush1.msra.mxu0 0.0
    %964 = vmatprep.subr.mxu0 0.0
    %965 = vmatpush1.msra.mxu0 0.0
    %966 = vmatprep.subr.mxu0 0.0
    %967 = vmatpush1.msra.mxu0 0.0
    %968 = vmatprep.subr.mxu0 0.0
    %969 = vmatpush1.msra.mxu0 0.0
    %970 = vmatprep.subr.mxu0 0.0
    %971 = vmatpush1.msra.mxu0 0.0
    %972 = vmatprep.subr.mxu0 0.0
    %973 = vmatpush1.msra.mxu0 0.0
    %974 = vmatprep.subr.mxu0 0.0
    %975 = vmatpush1.msra.mxu0 0.0
    %976 = vmatprep.subr.mxu0 0.0
    %977 = vmatpush1.msra.mxu0 0.0
    %978 = vmatprep.subr.mxu0 0.0
    %979 = vmatpush1.msra.mxu0 0.0
    %980 = vmatprep.subr.mxu0 0.0
    %981 = vmatpush1.msra.mxu0 0.0
    %982 = vmatprep.subr.mxu0 0.0
    %983 = vmatpush1.msra.mxu0 %v240
    %984 = vmatprep.subr.mxu0 0.0
    %985 = vmatpush1.msra.mxu0 %v239
    %986 = vmatprep.subr.mxu0 0.0
    %987 = vmatpush1.msra.mxu0 %v238
    %988 = vmatprep.subr.mxu0 0.0
    %989 = vmatpush1.msra.mxu0 %v237
    %990 = vmatprep.subr.mxu0 0.0
    %991 = vmatpush2.msra.mxu0 0.0
    %992 = vmatprep.subr.mxu0 0.0
    %993 = vmatpush2.msra.mxu0 0.0
    %994 = vmatprep.subr.mxu0 0.0
    %995 = vmatpush2.msra.mxu0 0.0
    %996 = vmatprep.subr.mxu0 0.0
    %997 = vmatpush2.msra.mxu0 0.0
    %998 = vmatprep.subr.mxu0 0.0
    %999 = vmatpush2.msra.mxu0 0.0
    %1000 = vmatprep.subr.mxu0 0.0
    %1001 = vmatpush2.msra.mxu0 0.0
    %1002 = vmatprep.subr.mxu0 0.0
    %1003 = vmatpush2.msra.mxu0 0.0
    %1004 = vmatprep.subr.mxu0 0.0
    %1005 = vmatpush2.msra.mxu0 0.0
    %1006 = vmatprep.subr.mxu0 0.0
    %1007 = vmatpush2.msra.mxu0 0.0
    %1008 = vmatprep.subr.mxu0 0.0
    %1009 = vmatpush2.msra.mxu0 0.0
    %1010 = vmatprep.subr.mxu0 0.0
    %1011 = vmatpush2.msra.mxu0 0.0
    %1012 = vmatprep.subr.mxu0 0.0
    %1013 = vmatpush2.msra.mxu0 0.0
    %1014 = vmatprep.subr.mxu0 0.0
    %1015 = vmatpush2.msra.mxu0 0.0
    %1016 = vmatprep.subr.mxu0 0.0
    %1017 = vmatpush2.msra.mxu0 0.0
    %1018 = vmatprep.subr.mxu0 0.0
    %1019 = vmatpush2.msra.mxu0 0.0
    %1020 = vmatprep.subr.mxu0 0.0
    %1021 = vmatpush2.msra.mxu0 0.0
    %1022 = vmatprep.mubr.f32.mxu0 0.0
    %1023 = vmatmul.mubr.f32.gmra.mxu0 %v956
    %v1024 = vpop.f32.mrf.mxu0
    %v1025 = vadd.f32 0.0, %v1024
    %v1026 = vpop.f32.mrf.mxu0
    %1027 = vdwg.mxu0
    %v1028 = vadd.f32 %v232, %v1025
    %v1029 = vxor.u32 %v1028, 2147483648
    %v1030 = vmul.f32 %v1029, 1.442695
    %v1031 = vpow.pop %v1030
    %v1032 = vadd.f32 %v1031, 1.0
    %v1033 = vrcp.pop %v1032
    %v1034 = vmul.f32 1.0, %v1033
    %v1035 = vmul.f32 %v1034, 2.0
    %v1036 = vsub.f32 %v1035, 1.0
    %v1037 = vmul.f32 %v1034, %v946
    %1039 = vrot.lane.b32.xlu0 %v1036, 64
    %v1040 = vpop.permute.xlu0 %1039
    %v1042 = vmul.f32 %v1034, %v1040
    %1044 = vrot.lane.b32.xlu0 %v1042, 32
    %v1045 = vpop.permute.xlu0 %1044
    %v1047 = vadd.f32 %v1037, %v1045
    %v1048 = vtanh.pop %v1047
    %1050 = vrot.lane.b32.xlu0 %v1048, 64
    %v1051 = vpop.permute.xlu0 %1050
    %v1053 = vmul.f32 %v1034, %v1051
    %1055 = vrot.lane.b32.xlu0 %v1053, 32
    %v1056 = vpop.permute.xlu0 %1055
    %1058 = vst.msk [vmem:[#allocation9] sm:$0xff] %vm243, %v1056
    %1060 = vrot.lane.b32.xlu0 %v1047, 96
    %v1061 = vpop.permute.xlu0 %1060
    %1063 = vst.msk [vmem:[#allocation11] sm:$0xff] %vm243, %v1061
    %v1064 = vld [vmem:[%s4] sm:$0xff]
    %v1065 = vld [vmem:[%s4 + $0x8] sm:$0xff]
    %v1066 = vld [vmem:[%s4 + $0x10] sm:$0xff]
    %v1067 = vld [vmem:[%s4 + $0x18] sm:$0xff]
    %v1068 = vld [vmem:[#allocation7] sm:$0x1]
    %v1070 = vlaneseq
    %v1071 = vshrl.u32 %v1070, 7
    %v1072 = vsub.s32 0, %v1071
    %v1073 = vrot.slane %v1068, %v1072
    %v1075 = vsel %vm243, %v1056, 0
    %1077 = vmatprep.subr.mxu0 0.0
    %1078 = vmatpush1.msra.mxu0 0.0
    %1079 = vmatprep.subr.mxu0 0.0
    %1080 = vmatpush1.msra.mxu0 0.0
    %1081 = vmatprep.subr.mxu0 0.0
    %1082 = vmatpush1.msra.mxu0 0.0
    %1083 = vmatprep.subr.mxu0 0.0
    %1084 = vmatpush1.msra.mxu0 0.0
    %1085 = vmatprep.subr.mxu0 0.0
    %1086 = vmatpush1.msra.mxu0 0.0
    %1087 = vmatprep.subr.mxu0 0.0
    %1088 = vmatpush1.msra.mxu0 0.0
    %1089 = vmatprep.subr.mxu0 0.0
    %1090 = vmatpush1.msra.mxu0 0.0
    %1091 = vmatprep.subr.mxu0 0.0
    %1092 = vmatpush1.msra.mxu0 0.0
    %1093 = vmatprep.subr.mxu0 0.0
    %1094 = vmatpush1.msra.mxu0 0.0
    %1095 = vmatprep.subr.mxu0 0.0
    %1096 = vmatpush1.msra.mxu0 0.0
    %1097 = vmatprep.subr.mxu0 0.0
    %1098 = vmatpush1.msra.mxu0 0.0
    %1099 = vmatprep.subr.mxu0 0.0
    %1100 = vmatpush1.msra.mxu0 0.0
    %1101 = vmatprep.subr.mxu0 0.0
    %1102 = vmatpush1.msra.mxu0 %v1067
    %1103 = vmatprep.subr.mxu0 0.0
    %1104 = vmatpush1.msra.mxu0 %v1066
    %1105 = vmatprep.subr.mxu0 0.0
    %1106 = vmatpush1.msra.mxu0 %v1065
    %1107 = vmatprep.subr.mxu0 0.0
    %1108 = vmatpush1.msra.mxu0 %v1064
    %1109 = vmatprep.subr.mxu0 0.0
    %1110 = vmatpush2.msra.mxu0 0.0
    %1111 = vmatprep.subr.mxu0 0.0
    %1112 = vmatpush2.msra.mxu0 0.0
    %1113 = vmatprep.subr.mxu0 0.0
    %1114 = vmatpush2.msra.mxu0 0.0
    %1115 = vmatprep.subr.mxu0 0.0
    %1116 = vmatpush2.msra.mxu0 0.0
    %1117 = vmatprep.subr.mxu0 0.0
    %1118 = vmatpush2.msra.mxu0 0.0
    %1119 = vmatprep.subr.mxu0 0.0
    %1120 = vmatpush2.msra.mxu0 0.0
    %1121 = vmatprep.subr.mxu0 0.0
    %1122 = vmatpush2.msra.mxu0 0.0
    %1123 = vmatprep.subr.mxu0 0.0
    %1124 = vmatpush2.msra.mxu0 0.0
    %1125 = vmatprep.subr.mxu0 0.0
    %1126 = vmatpush2.msra.mxu0 0.0
    %1127 = vmatprep.subr.mxu0 0.0
    %1128 = vmatpush2.msra.mxu0 0.0
    %1129 = vmatprep.subr.mxu0 0.0
    %1130 = vmatpush2.msra.mxu0 0.0
    %1131 = vmatprep.subr.mxu0 0.0
    %1132 = vmatpush2.msra.mxu0 0.0
    %1133 = vmatprep.subr.mxu0 0.0
    %1134 = vmatpush2.msra.mxu0 0.0
    %1135 = vmatprep.subr.mxu0 0.0
    %1136 = vmatpush2.msra.mxu0 0.0
    %1137 = vmatprep.subr.mxu0 0.0
    %1138 = vmatpush2.msra.mxu0 0.0
    %1139 = vmatprep.subr.mxu0 0.0
    %1140 = vmatpush2.msra.mxu0 0.0
    %1141 = vmatprep.mubr.f32.mxu0 0.0
    %1142 = vmatmul.mubr.f32.gmra.mxu0 %v1075
    %v1143 = vpop.f32.mrf.mxu0
    %v1144 = vadd.f32 %v1073, %v1143
    %v1145 = vpop.f32.mrf.mxu0
    %1146 = vdwg.mxu0
    %1147 = vst [vmem:[#allocation8] sm:$0xff] %v1144
    // Predicated region
    $region46: #{tpu_custom_call.1} parent=1 // pred_check
      _
    $region47: #{tpu_custom_call.1} parent=1 // pred_check_branch
      %1149 = sbr.rel (0) target = $region49
    $region48: #{tpu_custom_call.1} parent=1 // pred_region
      %s1151 = ssub.s32 128, 128
      %1152 = vsyncadd [#allocation4], %s1151
      %s1154 = sshll.u32 [#allocation8], 4
      %s1155 = int_to_ptr.vmem [resolvable:$true] %s1154
      %1157 = dma.vmem_to_hbm [thread:$0]  %s1155, 128, %s8, [#allocation4]
    $region49: #{tpu_custom_call.1} parent=1 // pred_fallthru
      _
    // Predicated region
    $region50: #{tpu_custom_call.1} parent=1 // pred_check
      _
    $region51: #{tpu_custom_call.1} parent=1 // pred_check_branch
      %1159 = sbr.rel (0) target = $region53
    $region52: #{tpu_custom_call.1} parent=1 // pred_region
      %s1161 = ssub.s32 128, 128
      %1162 = vsyncadd [#allocation10], %s1161
      %s1164 = sshll.u32 [#allocation9], 4
      %s1165 = int_to_ptr.vmem [resolvable:$true] %s1164
      %1167 = dma.vmem_to_hbm [thread:$0]  %s1165, 128, %s9, [#allocation10]
    $region53: #{tpu_custom_call.1} parent=1 // pred_fallthru
      _
    // Predicated region
    $region54: #{tpu_custom_call.1} parent=1 // pred_check
      _
    $region55: #{tpu_custom_call.1} parent=1 // pred_check_branch
      %1169 = sbr.rel (0) target = $region57
    $region56: #{tpu_custom_call.1} parent=1 // pred_region
      %s1171 = ssub.s32 128, 128
      %1172 = vsyncadd [#allocation10], %s1171
      %s1174 = sshll.u32 [#allocation11], 4
      %s1175 = int_to_ptr.vmem [resolvable:$true] %s1174
      %1177 = dma.vmem_to_hbm [thread:$0]  %s1175, 128, %s10, [#allocation10]
    $region57: #{tpu_custom_call.1} parent=1 // pred_fallthru
      _
    // Predicated region
    $region58: #{tpu_custom_call.1} parent=1 // pred_check
      _
    $region59: #{tpu_custom_call.1} parent=1 // pred_check_branch
      %1179 = sbr.rel (0) target = $region61
    $region60: #{tpu_custom_call.1} parent=1 // pred_region
      %1180 = dma.done [#allocation4], 128
    $region61: #{tpu_custom_call.1} parent=1 // pred_fallthru
      _
    // Predicated region
    $region62: #{tpu_custom_call.1} parent=1 // pred_check
      _
    $region63: #{tpu_custom_call.1} parent=1 // pred_check_branch
      %1182 = sbr.rel (0) target = $region65
    $region64: #{tpu_custom_call.1} parent=1 // pred_region
      %1183 = dma.done [#allocation10], 128
    $region65: #{tpu_custom_call.1} parent=1 // pred_fallthru
      _
    // Predicated region
    $region66: #{tpu_custom_call.1} parent=1 // pred_check
      _
    $region67: #{tpu_custom_call.1} parent=1 // pred_check_branch
      %1185 = sbr.rel (0) target = $region69
    $region68: #{tpu_custom_call.1} parent=1 // pred_region
      %1186 = dma.done [#allocation10], 128
    $region69: #{tpu_custom_call.1} parent=1 // pred_fallthru
      _
    %1187 = vsyncpa [#allocation3], 1
    %1188 = vsyncpa [#allocation6], 1
    %1189 = vsyncpa [#allocation4], 1
    %1190 = vsyncpa [#allocation10], 1

</llo_original>
